<compile_context>
chip_gen: v5e
topology: v5e:2x2
jax: 0.10.0
libtpu: 0.0.40
codegen_flags: <defaults>
</compile_context>

<pallas_src>
import jax
import jax.numpy as jnp
from jax.experimental import pallas as pl
from jax.experimental.pallas import tpu as pltpu


def _round_up(n, m):
    return ((n + m - 1) // m) * m


# --------------------------------------------------------------------------------------
# Kernel: fused 6-layer MLP forward for one batch tile.
# bf16 matmul operands, f32 MXU accumulation, f32 bias/ReLU/sigmoid (v5e-safe), bf16 store.
# TODO(synk): on v6e/v7x the bias+ReLU could run in bf16 (bf16-native VPU); kept f32 for
#             cross-generation safety.
# --------------------------------------------------------------------------------------
def _ae_kernel(x_ref,
               w1_ref, b1_ref, w2_ref, b2_ref, w3_ref, b3_ref,
               w4_ref, b4_ref, w5_ref, b5_ref, w6_ref, b6_ref,
               out_ref):
    def linear_f32(h_bf16, w_ref, b_ref):
        return jnp.dot(h_bf16, w_ref[...],
                       preferred_element_type=jnp.float32) + b_ref[...]

    # Raw f32 input tile -> bf16 in-kernel (no wrapper pad/cast pass over x in HBM).
    h = x_ref[...].astype(jnp.bfloat16)

    # Encoder (3x Linear+ReLU) and first two decoder layers (Linear+ReLU).
    for w_ref, b_ref in ((w1_ref, b1_ref), (w2_ref, b2_ref), (w3_ref, b3_ref),
                         (w4_ref, b4_ref), (w5_ref, b5_ref)):
        h = jnp.maximum(linear_f32(h, w_ref, b_ref), 0.0).astype(jnp.bfloat16)

    # Final decoder layer: Linear + Sigmoid, stored lane-dense in bf16.
    out_ref[...] = jax.nn.sigmoid(linear_f32(h, w6_ref, b6_ref)).astype(out_ref.dtype)


# --------------------------------------------------------------------------------------
# One-time parameter preparation (hoisted out of the per-step forward).
# --------------------------------------------------------------------------------------
def prepare_autoencoder_params(params):
    """params: list of 6 (W, b), W=(in,out) f32, b=(out,) f32.
    Returns padded bf16 weights / f32 biases plus dim metadata."""
    assert len(params) == 6
    dims = [params[0][0].shape[0]] + [w.shape[1] for w, _ in params]
    # First-layer input dim stays unpadded (x is fed raw); all later feature dims -> 128k.
    dims_p = [dims[0]] + [_round_up(d, 128) for d in dims[1:]]

    flat = []
    for li, (w, b) in enumerate(params):
        fi, fo = dims_p[li], dims_p[li + 1]
        w_p = jnp.pad(w, ((0, fi - w.shape[0]), (0, fo - w.shape[1]))).astype(jnp.bfloat16)
        b_p = jnp.pad(b.reshape(1, -1), ((0, 0), (0, fo - b.size))).astype(jnp.float32)
        flat += [w_p, b_p]
    return {"flat": tuple(flat), "dims": tuple(dims), "dims_p": tuple(dims_p)}


def _choose_batch_tile(B, batch_tile):
    """Multiple of 16 (bf16 sublanes), balanced tiles (no near-empty trailing tile),
    and at least 2 grid steps when B allows (v7x megacore)."""
    min_tile = 16
    num_tiles = pl.cdiv(B, batch_tile)
    if B >= 2 * min_tile:
        num_tiles = max(num_tiles, 2)
    tile = _round_up(pl.cdiv(B, num_tiles), min_tile)
    return min(tile, _round_up(B, min_tile))


def _build_specs(tile, dims_p, single_buffer_weights):
    weight_kwargs = {"pipeline_mode": pl.Buffered(1)} if single_buffer_weights else {}
    in_specs = [pl.BlockSpec((tile, dims_p[0]), lambda i: (i, 0))]  # raw f32 x tile
    for li in range(6):
        fi, fo = dims_p[li], dims_p[li + 1]
        in_specs.append(pl.BlockSpec((fi, fo), lambda i: (0, 0), **weight_kwargs))
        in_specs.append(pl.BlockSpec((1, fo), lambda i: (0, 0), **weight_kwargs))
    out_spec = pl.BlockSpec((tile, dims_p[-1]), lambda i: (i, 0))
    return in_specs, out_spec


def autoencoder_forward(x, prepared, *, batch_tile=1024):
    """x: (B, input_size) f32.  prepared: output of prepare_autoencoder_params.
    Returns (B, output_size) bf16 (caller upcasts if f32 is required)."""
    flat_params = prepared["flat"]
    dims, dims_p = prepared["dims"], prepared["dims_p"]
    B, d_in = x.shape
    assert d_in == dims[0]
    d_out = dims[-1]
    n_layers = 6

    tile = _choose_batch_tile(B, batch_tile)
    Bp = _round_up(B, tile)
    # Batch-only pad (usually a no-op); no lane pad and no dtype cast in the wrapper.
    x_p = x if Bp == B else jnp.pad(x, ((0, Bp - B), (0, 0)))

    # Advisory cost estimate for XLA scheduling.
    flops = 2 * Bp * sum(dims_p[i] * dims_p[i + 1] for i in range(n_layers))
    bytes_accessed = (x_p.size * x_p.dtype.itemsize
                      + sum(a.size * a.dtype.itemsize for a in flat_params)
                      + Bp * dims_p[-1] * 2)
    cost = pl.CostEstimate(flops=flops,
                           transcendentals=Bp * dims_p[-1],
                           bytes_accessed=bytes_accessed)

    # Explicit scoped-VMEM budget: double-buffered x/out tiles + weights + headroom.
    est = (2 * tile * _round_up(d_in, 128) * 4
           + 2 * tile * dims_p[-1] * 2
           + 2 * sum(a.size * a.dtype.itemsize for a in flat_params)
           + 6 * tile * max(dims_p[1:]) * 4)
    vmem_limit = int(min(64 * 1024 * 1024, max(32 * 1024 * 1024, 2 * est)))

    def run(single_buffer_weights):
        in_specs, out_spec = _build_specs(tile, dims_p, single_buffer_weights)
        return pl.pallas_call(
            _ae_kernel,
            out_shape=jax.ShapeDtypeStruct((Bp, dims_p[-1]), jnp.bfloat16),
            grid_spec=pltpu.PrefetchScalarGridSpec(
                num_scalar_prefetch=0,
                grid=(Bp // tile,),
                in_specs=in_specs,
                out_specs=out_spec,
            ),
            compiler_params=pltpu.CompilerParams(
                dimension_semantics=("parallel",),
                vmem_limit_bytes=vmem_limit),
            cost_estimate=cost,
        )(x_p, *flat_params)

    try:
        out_p = run(single_buffer_weights=True)
    except Exception:
        # pipeline_mode=pl.Buffered(1) unsupported on this jax/libtpu: fall back to the
        # default double-buffered weight fetch (correctness identical).
        out_p = run(single_buffer_weights=False)

    # Slice off batch padding and lane padding.
    return out_p[:B, :d_out]


# --------------------------------------------------------------------------------------
# Init + pure-JAX reference (same numerics: bf16 MXU operands, f32 acc, f32 elementwise).
# --------------------------------------------------------------------------------------
def init_linear(key, fan_in, fan_out):
    """nn.Linear-style init: U(-1/sqrt(fan_in), 1/sqrt(fan_in)); W returned as (in, out)."""
    kw, kb = jax.random.split(key)
    bound = 1.0 / jnp.sqrt(jnp.float32(fan_in))
    w = jax.random.uniform(kw, (fan_in, fan_out), jnp.float32, -bound, bound)
    b = jax.random.uniform(kb, (fan_out,), jnp.float32, -bound, bound)
    return w, b


def reference_forward(x, params):
    h = x.astype(jnp.bfloat16)
    n = len(params)
    y = None
    for idx, (w, b) in enumerate(params):
        y = jnp.dot(h, w.astype(jnp.bfloat16),
                    preferred_element_type=jnp.float32) + b
        if idx < n - 1:
            h = jnp.maximum(y, 0.0).astype(jnp.bfloat16)
    return jax.nn.sigmoid(y)


if __name__ == "__main__":
    # Shapes consistent with the module constructor:
    # Autoencoder(input_size=32, output_size=32, hidden_size1=32, hidden_size2=16, center_size=8)
    input_size, output_size = 32, 32
    hidden_size1, hidden_size2, center_size = 32, 16, 8
    batch = 16

    root = jax.random.PRNGKey(0)
    keys = jax.random.split(root, 7)

    layer_dims = [
        (input_size, hidden_size1),    # encoder L1
        (hidden_size1, hidden_size2),  # encoder L2
        (hidden_size2, center_size),   # encoder L3 (center)
        (center_size, hidden_size2),   # decoder L1
        (hidden_size2, hidden_size1),  # decoder L2
        (hidden_size1, output_size),   # decoder L3
    ]
    params = [init_linear(k, fi, fo) for k, (fi, fo) in zip(keys[:6], layer_dims)]

    # One-time parameter padding / bf16 cast (hoisted out of the forward pass).
    prepared = prepare_autoencoder_params(params)

    x = jax.random.normal(keys[6], (batch, input_size), jnp.float32)

    out = autoencoder_forward(x, prepared)
    out = jax.block_until_ready(out)

    ref = reference_forward(x, params)
    assert out.shape == (batch, output_size)
    err = float(jnp.max(jnp.abs(out.astype(jnp.float32) - ref)))
    assert err < 1e-2, f"mismatch vs JAX reference: max abs err {err}"

    print("KERNEL_OK")
</pallas_src>

<mosaic_0001>
module attributes {stable_mosaic.version = 11 : i64} {
  func.func @_ae_kernel(%arg0: i32, %arg1: memref<16x32xf32, #tpu.memory_space<vmem>>, %arg2: memref<32x128xbf16, #tpu.memory_space<vmem>>, %arg3: memref<1x128xf32, #tpu.memory_space<vmem>>, %arg4: memref<128x128xbf16, #tpu.memory_space<vmem>>, %arg5: memref<1x128xf32, #tpu.memory_space<vmem>>, %arg6: memref<128x128xbf16, #tpu.memory_space<vmem>>, %arg7: memref<1x128xf32, #tpu.memory_space<vmem>>, %arg8: memref<128x128xbf16, #tpu.memory_space<vmem>>, %arg9: memref<1x128xf32, #tpu.memory_space<vmem>>, %arg10: memref<128x128xbf16, #tpu.memory_space<vmem>>, %arg11: memref<1x128xf32, #tpu.memory_space<vmem>>, %arg12: memref<128x128xbf16, #tpu.memory_space<vmem>>, %arg13: memref<1x128xf32, #tpu.memory_space<vmem>>, %arg14: memref<16x128xbf16, #tpu.memory_space<vmem>>) attributes {dimension_semantics = [#tpu.dimension_semantics<parallel>], iteration_bounds = array<i64: 1>, scalar_prefetch = 0 : i64, scratch_operands = 0 : i64, tpu.core_type = #tpu.core_type<tc>, window_params = [{transform_indices = @transform_0, window_bounds = array<i64: 16, 32>}, {pipeline_mode = #tpu.pipeline_mode<synchronous>, transform_indices = @transform_1, window_bounds = array<i64: 32, 128>}, {pipeline_mode = #tpu.pipeline_mode<synchronous>, transform_indices = @transform_2, window_bounds = array<i64: 1, 128>}, {pipeline_mode = #tpu.pipeline_mode<synchronous>, transform_indices = @transform_3, window_bounds = array<i64: 128, 128>}, {pipeline_mode = #tpu.pipeline_mode<synchronous>, transform_indices = @transform_4, window_bounds = array<i64: 1, 128>}, {pipeline_mode = #tpu.pipeline_mode<synchronous>, transform_indices = @transform_5, window_bounds = array<i64: 128, 128>}, {pipeline_mode = #tpu.pipeline_mode<synchronous>, transform_indices = @transform_6, window_bounds = array<i64: 1, 128>}, {pipeline_mode = #tpu.pipeline_mode<synchronous>, transform_indices = @transform_7, window_bounds = array<i64: 128, 128>}, {pipeline_mode = #tpu.pipeline_mode<synchronous>, transform_indices = @transform_8, window_bounds = array<i64: 1, 128>}, {pipeline_mode = #tpu.pipeline_mode<synchronous>, transform_indices = @transform_9, window_bounds = array<i64: 128, 128>}, {pipeline_mode = #tpu.pipeline_mode<synchronous>, transform_indices = @transform_10, window_bounds = array<i64: 1, 128>}, {pipeline_mode = #tpu.pipeline_mode<synchronous>, transform_indices = @transform_11, window_bounds = array<i64: 128, 128>}, {pipeline_mode = #tpu.pipeline_mode<synchronous>, transform_indices = @transform_12, window_bounds = array<i64: 1, 128>}, {transform_indices = @transform_13, window_bounds = array<i64: 16, 128>}]} {
    %c0 = arith.constant 0 : index
    %c0_0 = arith.constant 0 : index
    %0 = vector.load %arg1[%c0, %c0_0] : memref<16x32xf32, #tpu.memory_space<vmem>>, vector<16x32xf32>
    %1 = arith.truncf %0 : vector<16x32xf32> to vector<16x32xbf16>
    %c0_1 = arith.constant 0 : index
    %c0_2 = arith.constant 0 : index
    %2 = vector.load %arg2[%c0_1, %c0_2] : memref<32x128xbf16, #tpu.memory_space<vmem>>, vector<32x128xbf16>
    %cst = arith.constant dense<0.000000e+00> : vector<16x128xf32>
    %3 = tpu.matmul %1, %2, %cst {dimension_numbers = #tpu.dot_dimension_numbers<[1], [0], [0], [1], [0, 0, 1, 1], [], []>} : vector<16x32xbf16>, vector<32x128xbf16>, vector<16x128xf32> -> vector<16x128xf32>
    %c0_3 = arith.constant 0 : index
    %c0_4 = arith.constant 0 : index
    %4 = vector.load %arg3[%c0_3, %c0_4] : memref<1x128xf32, #tpu.memory_space<vmem>>, vector<1x128xf32>
    %5 = vector.broadcast %4 : vector<1x128xf32> to vector<16x128xf32>
    %6 = arith.addf %3, %5 : vector<16x128xf32>
    %cst_5 = arith.constant 0.000000e+00 : f32
    %7 = vector.broadcast %cst_5 : f32 to vector<16x128xf32>
    %8 = arith.maximumf %6, %7 : vector<16x128xf32>
    %9 = arith.truncf %8 : vector<16x128xf32> to vector<16x128xbf16>
    %c0_6 = arith.constant 0 : index
    %c0_7 = arith.constant 0 : index
    %10 = vector.load %arg4[%c0_6, %c0_7] : memref<128x128xbf16, #tpu.memory_space<vmem>>, vector<128x128xbf16>
    %cst_8 = arith.constant dense<0.000000e+00> : vector<16x128xf32>
    %11 = tpu.matmul %9, %10, %cst_8 {dimension_numbers = #tpu.dot_dimension_numbers<[1], [0], [0], [1], [0, 0, 1, 1], [], []>} : vector<16x128xbf16>, vector<128x128xbf16>, vector<16x128xf32> -> vector<16x128xf32>
    %c0_9 = arith.constant 0 : index
    %c0_10 = arith.constant 0 : index
    %12 = vector.load %arg5[%c0_9, %c0_10] : memref<1x128xf32, #tpu.memory_space<vmem>>, vector<1x128xf32>
    %13 = vector.broadcast %12 : vector<1x128xf32> to vector<16x128xf32>
    %14 = arith.addf %11, %13 : vector<16x128xf32>
    %cst_11 = arith.constant 0.000000e+00 : f32
    %15 = vector.broadcast %cst_11 : f32 to vector<16x128xf32>
    %16 = arith.maximumf %14, %15 : vector<16x128xf32>
    %17 = arith.truncf %16 : vector<16x128xf32> to vector<16x128xbf16>
    %c0_12 = arith.constant 0 : index
    %c0_13 = arith.constant 0 : index
    %18 = vector.load %arg6[%c0_12, %c0_13] : memref<128x128xbf16, #tpu.memory_space<vmem>>, vector<128x128xbf16>
    %cst_14 = arith.constant dense<0.000000e+00> : vector<16x128xf32>
    %19 = tpu.matmul %17, %18, %cst_14 {dimension_numbers = #tpu.dot_dimension_numbers<[1], [0], [0], [1], [0, 0, 1, 1], [], []>} : vector<16x128xbf16>, vector<128x128xbf16>, vector<16x128xf32> -> vector<16x128xf32>
    %c0_15 = arith.constant 0 : index
    %c0_16 = arith.constant 0 : index
    %20 = vector.load %arg7[%c0_15, %c0_16] : memref<1x128xf32, #tpu.memory_space<vmem>>, vector<1x128xf32>
    %21 = vector.broadcast %20 : vector<1x128xf32> to vector<16x128xf32>
    %22 = arith.addf %19, %21 : vector<16x128xf32>
    %cst_17 = arith.constant 0.000000e+00 : f32
    %23 = vector.broadcast %cst_17 : f32 to vector<16x128xf32>
    %24 = arith.maximumf %22, %23 : vector<16x128xf32>
    %25 = arith.truncf %24 : vector<16x128xf32> to vector<16x128xbf16>
    %c0_18 = arith.constant 0 : index
    %c0_19 = arith.constant 0 : index
    %26 = vector.load %arg8[%c0_18, %c0_19] : memref<128x128xbf16, #tpu.memory_space<vmem>>, vector<128x128xbf16>
    %cst_20 = arith.constant dense<0.000000e+00> : vector<16x128xf32>
    %27 = tpu.matmul %25, %26, %cst_20 {dimension_numbers = #tpu.dot_dimension_numbers<[1], [0], [0], [1], [0, 0, 1, 1], [], []>} : vector<16x128xbf16>, vector<128x128xbf16>, vector<16x128xf32> -> vector<16x128xf32>
    %c0_21 = arith.constant 0 : index
    %c0_22 = arith.constant 0 : index
    %28 = vector.load %arg9[%c0_21, %c0_22] : memref<1x128xf32, #tpu.memory_space<vmem>>, vector<1x128xf32>
    %29 = vector.broadcast %28 : vector<1x128xf32> to vector<16x128xf32>
    %30 = arith.addf %27, %29 : vector<16x128xf32>
    %cst_23 = arith.constant 0.000000e+00 : f32
    %31 = vector.broadcast %cst_23 : f32 to vector<16x128xf32>
    %32 = arith.maximumf %30, %31 : vector<16x128xf32>
    %33 = arith.truncf %32 : vector<16x128xf32> to vector<16x128xbf16>
    %c0_24 = arith.constant 0 : index
    %c0_25 = arith.constant 0 : index
    %34 = vector.load %arg10[%c0_24, %c0_25] : memref<128x128xbf16, #tpu.memory_space<vmem>>, vector<128x128xbf16>
    %cst_26 = arith.constant dense<0.000000e+00> : vector<16x128xf32>
    %35 = tpu.matmul %33, %34, %cst_26 {dimension_numbers = #tpu.dot_dimension_numbers<[1], [0], [0], [1], [0, 0, 1, 1], [], []>} : vector<16x128xbf16>, vector<128x128xbf16>, vector<16x128xf32> -> vector<16x128xf32>
    %c0_27 = arith.constant 0 : index
    %c0_28 = arith.constant 0 : index
    %36 = vector.load %arg11[%c0_27, %c0_28] : memref<1x128xf32, #tpu.memory_space<vmem>>, vector<1x128xf32>
    %37 = vector.broadcast %36 : vector<1x128xf32> to vector<16x128xf32>
    %38 = arith.addf %35, %37 : vector<16x128xf32>
    %cst_29 = arith.constant 0.000000e+00 : f32
    %39 = vector.broadcast %cst_29 : f32 to vector<16x128xf32>
    %40 = arith.maximumf %38, %39 : vector<16x128xf32>
    %41 = arith.truncf %40 : vector<16x128xf32> to vector<16x128xbf16>
    %c0_30 = arith.constant 0 : index
    %c0_31 = arith.constant 0 : index
    %42 = vector.load %arg12[%c0_30, %c0_31] : memref<128x128xbf16, #tpu.memory_space<vmem>>, vector<128x128xbf16>
    %cst_32 = arith.constant dense<0.000000e+00> : vector<16x128xf32>
    %43 = tpu.matmul %41, %42, %cst_32 {dimension_numbers = #tpu.dot_dimension_numbers<[1], [0], [0], [1], [0, 0, 1, 1], [], []>} : vector<16x128xbf16>, vector<128x128xbf16>, vector<16x128xf32> -> vector<16x128xf32>
    %c0_33 = arith.constant 0 : index
    %c0_34 = arith.constant 0 : index
    %44 = vector.load %arg13[%c0_33, %c0_34] : memref<1x128xf32, #tpu.memory_space<vmem>>, vector<1x128xf32>
    %45 = vector.broadcast %44 : vector<1x128xf32> to vector<16x128xf32>
    %46 = arith.addf %43, %45 : vector<16x128xf32>
    %47 = arith.negf %46 : vector<16x128xf32>
    %48 = math.exp %47 : vector<16x128xf32>
    %cst_35 = arith.constant 1.000000e+00 : f32
    %49 = vector.broadcast %cst_35 : f32 to vector<16x128xf32>
    %50 = arith.addf %49, %48 : vector<16x128xf32>
    %51 = arith.divf %49, %50 : vector<16x128xf32>
    %52 = arith.truncf %51 : vector<16x128xf32> to vector<16x128xbf16>
    %c0_36 = arith.constant 0 : index
    %c0_37 = arith.constant 0 : index
    %53 = vector.load %arg14[%c0_36, %c0_37] : memref<16x128xbf16, #tpu.memory_space<vmem>>, vector<16x128xbf16>
    tpu.vector_store %arg14[%c0_36, %c0_37], %52 {strides = array<i32>} : memref<16x128xbf16, #tpu.memory_space<vmem>>, vector<16x128xbf16>,
    return
  }
  func.func @transform_0(%arg0: i32) -> (i32, i32) {
    %c0_i32 = arith.constant 0 : i32
    %c0_i32_0 = arith.constant 0 : i32
    return %arg0, %c0_i32 : i32, i32
  }
  func.func @transform_1(%arg0: i32) -> (i32, i32) {
    %c0_i32 = arith.constant 0 : i32
    %c0_i32_0 = arith.constant 0 : i32
    %c0_i32_1 = arith.constant 0 : i32
    return %c0_i32, %c0_i32_0 : i32, i32
  }
  func.func @transform_2(%arg0: i32) -> (i32, i32) {
    %c0_i32 = arith.constant 0 : i32
    %c0_i32_0 = arith.constant 0 : i32
    %c0_i32_1 = arith.constant 0 : i32
    return %c0_i32, %c0_i32_0 : i32, i32
  }
  func.func @transform_3(%arg0: i32) -> (i32, i32) {
    %c0_i32 = arith.constant 0 : i32
    %c0_i32_0 = arith.constant 0 : i32
    %c0_i32_1 = arith.constant 0 : i32
    return %c0_i32, %c0_i32_0 : i32, i32
  }
  func.func @transform_4(%arg0: i32) -> (i32, i32) {
    %c0_i32 = arith.constant 0 : i32
    %c0_i32_0 = arith.constant 0 : i32
    %c0_i32_1 = arith.constant 0 : i32
    return %c0_i32, %c0_i32_0 : i32, i32
  }
  func.func @transform_5(%arg0: i32) -> (i32, i32) {
    %c0_i32 = arith.constant 0 : i32
    %c0_i32_0 = arith.constant 0 : i32
    %c0_i32_1 = arith.constant 0 : i32
    return %c0_i32, %c0_i32_0 : i32, i32
  }
  func.func @transform_6(%arg0: i32) -> (i32, i32) {
    %c0_i32 = arith.constant 0 : i32
    %c0_i32_0 = arith.constant 0 : i32
    %c0_i32_1 = arith.constant 0 : i32
    return %c0_i32, %c0_i32_0 : i32, i32
  }
  func.func @transform_7(%arg0: i32) -> (i32, i32) {
    %c0_i32 = arith.constant 0 : i32
    %c0_i32_0 = arith.constant 0 : i32
    %c0_i32_1 = arith.constant 0 : i32
    return %c0_i32, %c0_i32_0 : i32, i32
  }
  func.func @transform_8(%arg0: i32) -> (i32, i32) {
    %c0_i32 = arith.constant 0 : i32
    %c0_i32_0 = arith.constant 0 : i32
    %c0_i32_1 = arith.constant 0 : i32
    return %c0_i32, %c0_i32_0 : i32, i32
  }
  func.func @transform_9(%arg0: i32) -> (i32, i32) {
    %c0_i32 = arith.constant 0 : i32
    %c0_i32_0 = arith.constant 0 : i32
    %c0_i32_1 = arith.constant 0 : i32
    return %c0_i32, %c0_i32_0 : i32, i32
  }
  func.func @transform_10(%arg0: i32) -> (i32, i32) {
    %c0_i32 = arith.constant 0 : i32
    %c0_i32_0 = arith.constant 0 : i32
    %c0_i32_1 = arith.constant 0 : i32
    return %c0_i32, %c0_i32_0 : i32, i32
  }
  func.func @transform_11(%arg0: i32) -> (i32, i32) {
    %c0_i32 = arith.constant 0 : i32
    %c0_i32_0 = arith.constant 0 : i32
    %c0_i32_1 = arith.constant 0 : i32
    return %c0_i32, %c0_i32_0 : i32, i32
  }
  func.func @transform_12(%arg0: i32) -> (i32, i32) {
    %c0_i32 = arith.constant 0 : i32
    %c0_i32_0 = arith.constant 0 : i32
    %c0_i32_1 = arith.constant 0 : i32
    return %c0_i32, %c0_i32_0 : i32, i32
  }
  func.func @transform_13(%arg0: i32) -> (i32, i32) {
    %c0_i32 = arith.constant 0 : i32
    %c0_i32_0 = arith.constant 0 : i32
    return %arg0, %c0_i32 : i32, i32
  }
}

module attributes {stable_mosaic.version = 11 : i64} {
  func.func @_ae_kernel(%arg0: i32, %arg1: memref<16x32xf32, #tpu.memory_space<vmem>>, %arg2: memref<32x128xbf16, #tpu.memory_space<vmem>>, %arg3: memref<1x128xf32, #tpu.memory_space<vmem>>, %arg4: memref<128x128xbf16, #tpu.memory_space<vmem>>, %arg5: memref<1x128xf32, #tpu.memory_space<vmem>>, %arg6: memref<128x128xbf16, #tpu.memory_space<vmem>>, %arg7: memref<1x128xf32, #tpu.memory_space<vmem>>, %arg8: memref<128x128xbf16, #tpu.memory_space<vmem>>, %arg9: memref<1x128xf32, #tpu.memory_space<vmem>>, %arg10: memref<128x128xbf16, #tpu.memory_space<vmem>>, %arg11: memref<1x128xf32, #tpu.memory_space<vmem>>, %arg12: memref<128x128xbf16, #tpu.memory_space<vmem>>, %arg13: memref<1x128xf32, #tpu.memory_space<vmem>>, %arg14: memref<16x128xbf16, #tpu.memory_space<vmem>>) attributes {dimension_semantics = [#tpu.dimension_semantics<parallel>], iteration_bounds = array<i64: 1>, scalar_prefetch = 0 : i64, scratch_operands = 0 : i64, tpu.core_type = #tpu.core_type<tc>, window_params = [{transform_indices = @transform_0, window_bounds = array<i64: 16, 32>}, {pipeline_mode = #tpu.pipeline_mode<synchronous>, transform_indices = @transform_1, window_bounds = array<i64: 32, 128>}, {pipeline_mode = #tpu.pipeline_mode<synchronous>, transform_indices = @transform_2, window_bounds = array<i64: 1, 128>}, {pipeline_mode = #tpu.pipeline_mode<synchronous>, transform_indices = @transform_3, window_bounds = array<i64: 128, 128>}, {pipeline_mode = #tpu.pipeline_mode<synchronous>, transform_indices = @transform_4, window_bounds = array<i64: 1, 128>}, {pipeline_mode = #tpu.pipeline_mode<synchronous>, transform_indices = @transform_5, window_bounds = array<i64: 128, 128>}, {pipeline_mode = #tpu.pipeline_mode<synchronous>, transform_indices = @transform_6, window_bounds = array<i64: 1, 128>}, {pipeline_mode = #tpu.pipeline_mode<synchronous>, transform_indices = @transform_7, window_bounds = array<i64: 128, 128>}, {pipeline_mode = #tpu.pipeline_mode<synchronous>, transform_indices = @transform_8, window_bounds = array<i64: 1, 128>}, {pipeline_mode = #tpu.pipeline_mode<synchronous>, transform_indices = @transform_9, window_bounds = array<i64: 128, 128>}, {pipeline_mode = #tpu.pipeline_mode<synchronous>, transform_indices = @transform_10, window_bounds = array<i64: 1, 128>}, {pipeline_mode = #tpu.pipeline_mode<synchronous>, transform_indices = @transform_11, window_bounds = array<i64: 128, 128>}, {pipeline_mode = #tpu.pipeline_mode<synchronous>, transform_indices = @transform_12, window_bounds = array<i64: 1, 128>}, {transform_indices = @transform_13, window_bounds = array<i64: 16, 128>}]} {
    %c0 = arith.constant 0 : index
    %c0_0 = arith.constant 0 : index
    %0 = vector.load %arg1[%c0, %c0_0] : memref<16x32xf32, #tpu.memory_space<vmem>>, vector<16x32xf32>
    %1 = arith.truncf %0 : vector<16x32xf32> to vector<16x32xbf16>
    %c0_1 = arith.constant 0 : index
    %c0_2 = arith.constant 0 : index
    %2 = vector.load %arg2[%c0_1, %c0_2] : memref<32x128xbf16, #tpu.memory_space<vmem>>, vector<32x128xbf16>
    %cst = arith.constant dense<0.000000e+00> : vector<16x128xf32>
    %3 = tpu.matmul %1, %2, %cst {dimension_numbers = #tpu.dot_dimension_numbers<[1], [0], [0], [1], [0, 0, 1, 1], [], []>} : vector<16x32xbf16>, vector<32x128xbf16>, vector<16x128xf32> -> vector<16x128xf32>
    %c0_3 = arith.constant 0 : index
    %c0_4 = arith.constant 0 : index
    %4 = vector.load %arg3[%c0_3, %c0_4] : memref<1x128xf32, #tpu.memory_space<vmem>>, vector<1x128xf32>
    %5 = vector.broadcast %4 : vector<1x128xf32> to vector<16x128xf32>
    %6 = arith.addf %3, %5 : vector<16x128xf32>
    %cst_5 = arith.constant 0.000000e+00 : f32
    %7 = vector.broadcast %cst_5 : f32 to vector<16x128xf32>
    %8 = arith.maximumf %6, %7 : vector<16x128xf32>
    %9 = arith.truncf %8 : vector<16x128xf32> to vector<16x128xbf16>
    %c0_6 = arith.constant 0 : index
    %c0_7 = arith.constant 0 : index
    %10 = vector.load %arg4[%c0_6, %c0_7] : memref<128x128xbf16, #tpu.memory_space<vmem>>, vector<128x128xbf16>
    %cst_8 = arith.constant dense<0.000000e+00> : vector<16x128xf32>
    %11 = tpu.matmul %9, %10, %cst_8 {dimension_numbers = #tpu.dot_dimension_numbers<[1], [0], [0], [1], [0, 0, 1, 1], [], []>} : vector<16x128xbf16>, vector<128x128xbf16>, vector<16x128xf32> -> vector<16x128xf32>
    %c0_9 = arith.constant 0 : index
    %c0_10 = arith.constant 0 : index
    %12 = vector.load %arg5[%c0_9, %c0_10] : memref<1x128xf32, #tpu.memory_space<vmem>>, vector<1x128xf32>
    %13 = vector.broadcast %12 : vector<1x128xf32> to vector<16x128xf32>
    %14 = arith.addf %11, %13 : vector<16x128xf32>
    %cst_11 = arith.constant 0.000000e+00 : f32
    %15 = vector.broadcast %cst_11 : f32 to vector<16x128xf32>
    %16 = arith.maximumf %14, %15 : vector<16x128xf32>
    %17 = arith.truncf %16 : vector<16x128xf32> to vector<16x128xbf16>
    %c0_12 = arith.constant 0 : index
    %c0_13 = arith.constant 0 : index
    %18 = vector.load %arg6[%c0_12, %c0_13] : memref<128x128xbf16, #tpu.memory_space<vmem>>, vector<128x128xbf16>
    %cst_14 = arith.constant dense<0.000000e+00> : vector<16x128xf32>
    %19 = tpu.matmul %17, %18, %cst_14 {dimension_numbers = #tpu.dot_dimension_numbers<[1], [0], [0], [1], [0, 0, 1, 1], [], []>} : vector<16x128xbf16>, vector<128x128xbf16>, vector<16x128xf32> -> vector<16x128xf32>
    %c0_15 = arith.constant 0 : index
    %c0_16 = arith.constant 0 : index
    %20 = vector.load %arg7[%c0_15, %c0_16] : memref<1x128xf32, #tpu.memory_space<vmem>>, vector<1x128xf32>
    %21 = vector.broadcast %20 : vector<1x128xf32> to vector<16x128xf32>
    %22 = arith.addf %19, %21 : vector<16x128xf32>
    %cst_17 = arith.constant 0.000000e+00 : f32
    %23 = vector.broadcast %cst_17 : f32 to vector<16x128xf32>
    %24 = arith.maximumf %22, %23 : vector<16x128xf32>
    %25 = arith.truncf %24 : vector<16x128xf32> to vector<16x128xbf16>
    %c0_18 = arith.constant 0 : index
    %c0_19 = arith.constant 0 : index
    %26 = vector.load %arg8[%c0_18, %c0_19] : memref<128x128xbf16, #tpu.memory_space<vmem>>, vector<128x128xbf16>
    %cst_20 = arith.constant dense<0.000000e+00> : vector<16x128xf32>
    %27 = tpu.matmul %25, %26, %cst_20 {dimension_numbers = #tpu.dot_dimension_numbers<[1], [0], [0], [1], [0, 0, 1, 1], [], []>} : vector<16x128xbf16>, vector<128x128xbf16>, vector<16x128xf32> -> vector<16x128xf32>
    %c0_21 = arith.constant 0 : index
    %c0_22 = arith.constant 0 : index
    %28 = vector.load %arg9[%c0_21, %c0_22] : memref<1x128xf32, #tpu.memory_space<vmem>>, vector<1x128xf32>
    %29 = vector.broadcast %28 : vector<1x128xf32> to vector<16x128xf32>
    %30 = arith.addf %27, %29 : vector<16x128xf32>
    %cst_23 = arith.constant 0.000000e+00 : f32
    %31 = vector.broadcast %cst_23 : f32 to vector<16x128xf32>
    %32 = arith.maximumf %30, %31 : vector<16x128xf32>
    %33 = arith.truncf %32 : vector<16x128xf32> to vector<16x128xbf16>
    %c0_24 = arith.constant 0 : index
    %c0_25 = arith.constant 0 : index
    %34 = vector.load %arg10[%c0_24, %c0_25] : memref<128x128xbf16, #tpu.memory_space<vmem>>, vector<128x128xbf16>
    %cst_26 = arith.constant dense<0.000000e+00> : vector<16x128xf32>
    %35 = tpu.matmul %33, %34, %cst_26 {dimension_numbers = #tpu.dot_dimension_numbers<[1], [0], [0], [1], [0, 0, 1, 1], [], []>} : vector<16x128xbf16>, vector<128x128xbf16>, vector<16x128xf32> -> vector<16x128xf32>
    %c0_27 = arith.constant 0 : index
    %c0_28 = arith.constant 0 : index
    %36 = vector.load %arg11[%c0_27, %c0_28] : memref<1x128xf32, #tpu.memory_space<vmem>>, vector<1x128xf32>
    %37 = vector.broadcast %36 : vector<1x128xf32> to vector<16x128xf32>
    %38 = arith.addf %35, %37 : vector<16x128xf32>
    %cst_29 = arith.constant 0.000000e+00 : f32
    %39 = vector.broadcast %cst_29 : f32 to vector<16x128xf32>
    %40 = arith.maximumf %38, %39 : vector<16x128xf32>
    %41 = arith.truncf %40 : vector<16x128xf32> to vector<16x128xbf16>
    %c0_30 = arith.constant 0 : index
    %c0_31 = arith.constant 0 : index
    %42 = vector.load %arg12[%c0_30, %c0_31] : memref<128x128xbf16, #tpu.memory_space<vmem>>, vector<128x128xbf16>
    %cst_32 = arith.constant dense<0.000000e+00> : vector<16x128xf32>
    %43 = tpu.matmul %41, %42, %cst_32 {dimension_numbers = #tpu.dot_dimension_numbers<[1], [0], [0], [1], [0, 0, 1, 1], [], []>} : vector<16x128xbf16>, vector<128x128xbf16>, vector<16x128xf32> -> vector<16x128xf32>
    %c0_33 = arith.constant 0 : index
    %c0_34 = arith.constant 0 : index
    %44 = vector.load %arg13[%c0_33, %c0_34] : memref<1x128xf32, #tpu.memory_space<vmem>>, vector<1x128xf32>
    %45 = vector.broadcast %44 : vector<1x128xf32> to vector<16x128xf32>
    %46 = arith.addf %43, %45 : vector<16x128xf32>
    %47 = arith.negf %46 : vector<16x128xf32>
    %48 = math.exp %47 : vector<16x128xf32>
    %cst_35 = arith.constant 1.000000e+00 : f32
    %49 = vector.broadcast %cst_35 : f32 to vector<16x128xf32>
    %50 = arith.addf %49, %48 : vector<16x128xf32>
    %51 = arith.divf %49, %50 : vector<16x128xf32>
    %52 = arith.truncf %51 : vector<16x128xf32> to vector<16x128xbf16>
    %c0_36 = arith.constant 0 : index
    %c0_37 = arith.constant 0 : index
    %53 = vector.load %arg14[%c0_36, %c0_37] : memref<16x128xbf16, #tpu.memory_space<vmem>>, vector<16x128xbf16>
    tpu.vector_store %arg14[%c0_36, %c0_37], %52 {strides = array<i32>} : memref<16x128xbf16, #tpu.memory_space<vmem>>, vector<16x128xbf16>,
    return
  }
  func.func @transform_0(%arg0: i32) -> (i32, i32) {
    %c0_i32 = arith.constant 0 : i32
    %c0_i32_0 = arith.constant 0 : i32
    return %arg0, %c0_i32 : i32, i32
  }
  func.func @transform_1(%arg0: i32) -> (i32, i32) {
    %c0_i32 = arith.constant 0 : i32
    %c0_i32_0 = arith.constant 0 : i32
    %c0_i32_1 = arith.constant 0 : i32
    return %c0_i32, %c0_i32_0 : i32, i32
  }
  func.func @transform_2(%arg0: i32) -> (i32, i32) {
    %c0_i32 = arith.constant 0 : i32
    %c0_i32_0 = arith.constant 0 : i32
    %c0_i32_1 = arith.constant 0 : i32
    return %c0_i32, %c0_i32_0 : i32, i32
  }
  func.func @transform_3(%arg0: i32) -> (i32, i32) {
    %c0_i32 = arith.constant 0 : i32
    %c0_i32_0 = arith.constant 0 : i32
    %c0_i32_1 = arith.constant 0 : i32
    return %c0_i32, %c0_i32_0 : i32, i32
  }
  func.func @transform_4(%arg0: i32) -> (i32, i32) {
    %c0_i32 = arith.constant 0 : i32
    %c0_i32_0 = arith.constant 0 : i32
    %c0_i32_1 = arith.constant 0 : i32
    return %c0_i32, %c0_i32_0 : i32, i32
  }
  func.func @transform_5(%arg0: i32) -> (i32, i32) {
    %c0_i32 = arith.constant 0 : i32
    %c0_i32_0 = arith.constant 0 : i32
    %c0_i32_1 = arith.constant 0 : i32
    return %c0_i32, %c0_i32_0 : i32, i32
  }
  func.func @transform_6(%arg0: i32) -> (i32, i32) {
    %c0_i32 = arith.constant 0 : i32
    %c0_i32_0 = arith.constant 0 : i32
    %c0_i32_1 = arith.constant 0 : i32
    return %c0_i32, %c0_i32_0 : i32, i32
  }
  func.func @transform_7(%arg0: i32) -> (i32, i32) {
    %c0_i32 = arith.constant 0 : i32
    %c0_i32_0 = arith.constant 0 : i32
    %c0_i32_1 = arith.constant 0 : i32
    return %c0_i32, %c0_i32_0 : i32, i32
  }
  func.func @transform_8(%arg0: i32) -> (i32, i32) {
    %c0_i32 = arith.constant 0 : i32
    %c0_i32_0 = arith.constant 0 : i32
    %c0_i32_1 = arith.constant 0 : i32
    return %c0_i32, %c0_i32_0 : i32, i32
  }
  func.func @transform_9(%arg0: i32) -> (i32, i32) {
    %c0_i32 = arith.constant 0 : i32
    %c0_i32_0 = arith.constant 0 : i32
    %c0_i32_1 = arith.constant 0 : i32
    return %c0_i32, %c0_i32_0 : i32, i32
  }
  func.func @transform_10(%arg0: i32) -> (i32, i32) {
    %c0_i32 = arith.constant 0 : i32
    %c0_i32_0 = arith.constant 0 : i32
    %c0_i32_1 = arith.constant 0 : i32
    return %c0_i32, %c0_i32_0 : i32, i32
  }
  func.func @transform_11(%arg0: i32) -> (i32, i32) {
    %c0_i32 = arith.constant 0 : i32
    %c0_i32_0 = arith.constant 0 : i32
    %c0_i32_1 = arith.constant 0 : i32
    return %c0_i32, %c0_i32_0 : i32, i32
  }
  func.func @transform_12(%arg0: i32) -> (i32, i32) {
    %c0_i32 = arith.constant 0 : i32
    %c0_i32_0 = arith.constant 0 : i32
    %c0_i32_1 = arith.constant 0 : i32
    return %c0_i32, %c0_i32_0 : i32, i32
  }
  func.func @transform_13(%arg0: i32) -> (i32, i32) {
    %c0_i32 = arith.constant 0 : i32
    %c0_i32_0 = arith.constant 0 : i32
    return %arg0, %c0_i32 : i32, i32
  }
}

</mosaic_0001>

<llo_original>
// kernel: tpu_custom_call.1
$region0: #{tpu_custom_call.1}
  #allocation0 [shape = 'u32[]', space=smem, size = 0x4, offset = 0x4, fixed_abs, tag = 'smem constant byte address 0x4 - core index']
  #allocation1 [shape = 'u32[72,128]{1,0:T(1,128)}', space=vmem, size = 0x9000, scoped, tag = 'internal scratch']
  %s0 = inlined_call_operand.hbm [shape: f32[16,32], index: 0, kind: input, shape index: {}]
  %s1 = inlined_call_operand.hbm [shape: bf16[32,128], index: 1, kind: input, shape index: {}]
  %s2 = inlined_call_operand.vmem [shape: f32[1,128], index: 2, kind: input, shape index: {}]
  %s3 = inlined_call_operand.hbm [shape: bf16[128,128], index: 3, kind: input, shape index: {}]
  %s4 = inlined_call_operand.vmem [shape: f32[1,128], index: 4, kind: input, shape index: {}]
  %s5 = inlined_call_operand.hbm [shape: bf16[128,128], index: 5, kind: input, shape index: {}]
  %s6 = inlined_call_operand.vmem [shape: f32[1,128], index: 6, kind: input, shape index: {}]
  %s7 = inlined_call_operand.hbm [shape: bf16[128,128], index: 7, kind: input, shape index: {}]
  %s8 = inlined_call_operand.vmem [shape: f32[1,128], index: 8, kind: input, shape index: {}]
  %s9 = inlined_call_operand.hbm [shape: bf16[128,128], index: 9, kind: input, shape index: {}]
  %s10 = inlined_call_operand.vmem [shape: f32[1,128], index: 10, kind: input, shape index: {}]
  %s11 = inlined_call_operand.hbm [shape: bf16[128,128], index: 11, kind: input, shape index: {}]
  %s12 = inlined_call_operand.vmem [shape: f32[1,128], index: 12, kind: input, shape index: {}]
  %s13 = inlined_call_operand.hbm [shape: bf16[16,128], index: 13, kind: output, shape index: {}]
  %s14 = sld [smem:[#allocation0]]
  $region90: #{tpu_custom_call.1} parent=0
    _
  %s16 = ssub.s32 1, %s14
  %s17 = scalar_select 0, %s16, %s14
  $region1: #{tpu_custom_call.1} parent=0
    #allocation2 [shape = 'u8[8192]{0}', space=vmem, size = 0x2000, scoped, tag = 'input window, operand 0, single buffered']
    #allocation3 [shape = 's32[1]{0}', space=sflag, size = 0x4, scoped, tag = 'scoped memory for tpu_custom_call.1']
    #allocation4 [shape = 's32[1]{0}', space=sflag, size = 0x4, scoped, tag = 'scoped memory for tpu_custom_call.1']
    #allocation5 [shape = 'u8[8192]{0}', space=vmem, size = 0x2000, scoped, tag = 'input window, operand 1, single buffered']
    #allocation6 [shape = 's32[1]{0}', space=sflag, size = 0x4, scoped, tag = 'scoped memory for tpu_custom_call.1']
    #allocation7 [shape = 'u8[32768]{0}', space=vmem, size = 0x8000, scoped, tag = 'input window, operand 3, single buffered']
    #allocation8 [shape = 'u8[32768]{0}', space=vmem, size = 0x8000, scoped, tag = 'input window, operand 5, single buffered']
    #allocation9 [shape = 's32[1]{0}', space=sflag, size = 0x4, scoped, tag = 'scoped memory for tpu_custom_call.1']
    #allocation10 [shape = 'u8[32768]{0}', space=vmem, size = 0x8000, scoped, tag = 'input window, operand 7, single buffered']
    #allocation11 [shape = 'u8[32768]{0}', space=vmem, size = 0x8000, scoped, tag = 'input window, operand 9, single buffered']
    #allocation12 [shape = 's32[1]{0}', space=sflag, size = 0x4, scoped, tag = 'scoped memory for tpu_custom_call.1']
    #allocation13 [shape = 'u8[32768]{0}', space=vmem, size = 0x8000, scoped, tag = 'input window, operand 11, single buffered']
    #allocation14 [shape = 'u8[4096]{0}', space=vmem, size = 0x1000, scoped, tag = 'output window, operand 0, single buffered']
    %18 = vsyncpa [#allocation3], 0
    %19 = vsyncpa [#allocation6], 0
    %20 = vsyncpa [#allocation9], 0
    %21 = vsyncpa [#allocation12], 0
    %22 = vsyncpa [#allocation4], 0
    // Predicated region
    $region2: #{tpu_custom_call.1} parent=1 // pred_check
      _
    $region3: #{tpu_custom_call.1} parent=1 // pred_check_branch
      %24 = sbr.rel (0) target = $region5
    $region4: #{tpu_custom_call.1} parent=1 // pred_region
      %26 = vsyncadd [#allocation3], 0
      %s27 = sshll.u32 %s0, 4
      %s28 = int_to_ptr.hbm [resolvable:$true] %s27
      %s29 = sshll.u32 [#allocation2], 4
      %s30 = int_to_ptr.vmem [resolvable:$true] %s29
      %35 = dma.hbm_to_vmem [thread:$0]  %s28, 256, %s30, [#allocation3], 128, 128, 8
    $region5: #{tpu_custom_call.1} parent=1 // pred_fallthru
      _
    // Predicated region
    $region6: #{tpu_custom_call.1} parent=1 // pred_check
      _
    $region7: #{tpu_custom_call.1} parent=1 // pred_check_branch
      %37 = sbr.rel (0) target = $region9
    $region8: #{tpu_custom_call.1} parent=1 // pred_region
      %39 = vsyncadd [#allocation6], 0
      %s40 = sshll.u32 %s1, 4
      %s41 = int_to_ptr.hbm [resolvable:$true] %s40
      %s42 = sshll.u32 [#allocation5], 4
      %s43 = int_to_ptr.vmem [resolvable:$true] %s42
      %48 = dma.hbm_to_vmem [thread:$0]  %s41, 256, %s43, [#allocation6], 64, 64, 4
    $region9: #{tpu_custom_call.1} parent=1 // pred_fallthru
      _
    // Predicated region
    $region10: #{tpu_custom_call.1} parent=1 // pred_check
      _
    $region11: #{tpu_custom_call.1} parent=1 // pred_check_branch
      %50 = sbr.rel (0) target = $region13
    $region12: #{tpu_custom_call.1} parent=1 // pred_region
      _
    $region13: #{tpu_custom_call.1} parent=1 // pred_fallthru
      _
    // Predicated region
    $region14: #{tpu_custom_call.1} parent=1 // pred_check
      _
    $region15: #{tpu_custom_call.1} parent=1 // pred_check_branch
      %52 = sbr.rel (0) target = $region17
    $region16: #{tpu_custom_call.1} parent=1 // pred_region
      %54 = vsyncadd [#allocation6], 0
      %s55 = sshll.u32 %s3, 4
      %s56 = int_to_ptr.hbm [resolvable:$true] %s55
      %s57 = sshll.u32 [#allocation7], 4
      %s58 = int_to_ptr.vmem [resolvable:$true] %s57
      %63 = dma.hbm_to_vmem [thread:$0]  %s56, 1024, %s58, [#allocation6], 64, 64, 4
    $region17: #{tpu_custom_call.1} parent=1 // pred_fallthru
      _
    // Predicated region
    $region18: #{tpu_custom_call.1} parent=1 // pred_check
      _
    $region19: #{tpu_custom_call.1} parent=1 // pred_check_branch
      %65 = sbr.rel (0) target = $region21
    $region20: #{tpu_custom_call.1} parent=1 // pred_region
      _
    $region21: #{tpu_custom_call.1} parent=1 // pred_fallthru
      _
    // Predicated region
    $region22: #{tpu_custom_call.1} parent=1 // pred_check
      _
    $region23: #{tpu_custom_call.1} parent=1 // pred_check_branch
      %67 = sbr.rel (0) target = $region25
    $region24: #{tpu_custom_call.1} parent=1 // pred_region
      %69 = vsyncadd [#allocation9], 0
      %s70 = sshll.u32 %s5, 4
      %s71 = int_to_ptr.hbm [resolvable:$true] %s70
      %s72 = sshll.u32 [#allocation8], 4
      %s73 = int_to_ptr.vmem [resolvable:$true] %s72
      %78 = dma.hbm_to_vmem [thread:$0]  %s71, 1024, %s73, [#allocation9], 64, 64, 4
    $region25: #{tpu_custom_call.1} parent=1 // pred_fallthru
      _
    // Predicated region
    $region26: #{tpu_custom_call.1} parent=1 // pred_check
      _
    $region27: #{tpu_custom_call.1} parent=1 // pred_check_branch
      %80 = sbr.rel (0) target = $region29
    $region28: #{tpu_custom_call.1} parent=1 // pred_region
      _
    $region29: #{tpu_custom_call.1} parent=1 // pred_fallthru
      _
    // Predicated region
    $region30: #{tpu_custom_call.1} parent=1 // pred_check
      _
    $region31: #{tpu_custom_call.1} parent=1 // pred_check_branch
      %82 = sbr.rel (0) target = $region33
    $region32: #{tpu_custom_call.1} parent=1 // pred_region
      %84 = vsyncadd [#allocation9], 0
      %s85 = sshll.u32 %s7, 4
      %s86 = int_to_ptr.hbm [resolvable:$true] %s85
      %s87 = sshll.u32 [#allocation10], 4
      %s88 = int_to_ptr.vmem [resolvable:$true] %s87
      %93 = dma.hbm_to_vmem [thread:$0]  %s86, 1024, %s88, [#allocation9], 64, 64, 4
    $region33: #{tpu_custom_call.1} parent=1 // pred_fallthru
      _
    // Predicated region
    $region34: #{tpu_custom_call.1} parent=1 // pred_check
      _
    $region35: #{tpu_custom_call.1} parent=1 // pred_check_branch
      %95 = sbr.rel (0) target = $region37
    $region36: #{tpu_custom_call.1} parent=1 // pred_region
      _
    $region37: #{tpu_custom_call.1} parent=1 // pred_fallthru
      _
    // Predicated region
    $region38: #{tpu_custom_call.1} parent=1 // pred_check
      _
    $region39: #{tpu_custom_call.1} parent=1 // pred_check_branch
      %97 = sbr.rel (0) target = $region41
    $region40: #{tpu_custom_call.1} parent=1 // pred_region
      %99 = vsyncadd [#allocation12], 0
      %s100 = sshll.u32 %s9, 4
      %s101 = int_to_ptr.hbm [resolvable:$true] %s100
      %s102 = sshll.u32 [#allocation11], 4
      %s103 = int_to_ptr.vmem [resolvable:$true] %s102
      %108 = dma.hbm_to_vmem [thread:$0]  %s101, 1024, %s103, [#allocation12], 64, 64, 4
    $region41: #{tpu_custom_call.1} parent=1 // pred_fallthru
      _
    // Predicated region
    $region42: #{tpu_custom_call.1} parent=1 // pred_check
      _
    $region43: #{tpu_custom_call.1} parent=1 // pred_check_branch
      %110 = sbr.rel (0) target = $region45
    $region44: #{tpu_custom_call.1} parent=1 // pred_region
      _
    $region45: #{tpu_custom_call.1} parent=1 // pred_fallthru
      _
    // Predicated region
    $region46: #{tpu_custom_call.1} parent=1 // pred_check
      _
    $region47: #{tpu_custom_call.1} parent=1 // pred_check_branch
      %112 = sbr.rel (0) target = $region49
    $region48: #{tpu_custom_call.1} parent=1 // pred_region
      %114 = vsyncadd [#allocation12], 0
      %s115 = sshll.u32 %s11, 4
      %s116 = int_to_ptr.hbm [resolvable:$true] %s115
      %s117 = sshll.u32 [#allocation13], 4
      %s118 = int_to_ptr.vmem [resolvable:$true] %s117
      %123 = dma.hbm_to_vmem [thread:$0]  %s116, 1024, %s118, [#allocation12], 64, 64, 4
    $region49: #{tpu_custom_call.1} parent=1 // pred_fallthru
      _
    // Predicated region
    $region50: #{tpu_custom_call.1} parent=1 // pred_check
      _
    $region51: #{tpu_custom_call.1} parent=1 // pred_check_branch
      %125 = sbr.rel (0) target = $region53
    $region52: #{tpu_custom_call.1} parent=1 // pred_region
      _
    $region53: #{tpu_custom_call.1} parent=1 // pred_fallthru
      _
    // Predicated region
    $region54: #{tpu_custom_call.1} parent=1 // pred_check
      _
    $region55: #{tpu_custom_call.1} parent=1 // pred_check_branch
      %127 = sbr.rel (0) target = $region57
    $region56: #{tpu_custom_call.1} parent=1 // pred_region
      %129 = dma.done [#allocation3], 256
    $region57: #{tpu_custom_call.1} parent=1 // pred_fallthru
      _
    // Predicated region
    $region58: #{tpu_custom_call.1} parent=1 // pred_check
      _
    $region59: #{tpu_custom_call.1} parent=1 // pred_check_branch
      %131 = sbr.rel (0) target = $region61
    $region60: #{tpu_custom_call.1} parent=1 // pred_region
      %133 = dma.done [#allocation6], 256
    $region61: #{tpu_custom_call.1} parent=1 // pred_fallthru
      _
    // Predicated region
    $region62: #{tpu_custom_call.1} parent=1 // pred_check
      _
    $region63: #{tpu_custom_call.1} parent=1 // pred_check_branch
      %135 = sbr.rel (0) target = $region65
    $region64: #{tpu_custom_call.1} parent=1 // pred_region
      %137 = dma.done [#allocation6], 1024
    $region65: #{tpu_custom_call.1} parent=1 // pred_fallthru
      _
    // Predicated region
    $region66: #{tpu_custom_call.1} parent=1 // pred_check
      _
    $region67: #{tpu_custom_call.1} parent=1 // pred_check_branch
      %139 = sbr.rel (0) target = $region69
    $region68: #{tpu_custom_call.1} parent=1 // pred_region
      %141 = dma.done [#allocation9], 1024
    $region69: #{tpu_custom_call.1} parent=1 // pred_fallthru
      _
    // Predicated region
    $region70: #{tpu_custom_call.1} parent=1 // pred_check
      _
    $region71: #{tpu_custom_call.1} parent=1 // pred_check_branch
      %143 = sbr.rel (0) target = $region73
    $region72: #{tpu_custom_call.1} parent=1 // pred_region
      %145 = dma.done [#allocation9], 1024
    $region73: #{tpu_custom_call.1} parent=1 // pred_fallthru
      _
    // Predicated region
    $region74: #{tpu_custom_call.1} parent=1 // pred_check
      _
    $region75: #{tpu_custom_call.1} parent=1 // pred_check_branch
      %147 = sbr.rel (0) target = $region77
    $region76: #{tpu_custom_call.1} parent=1 // pred_region
      %149 = dma.done [#allocation12], 1024
    $region77: #{tpu_custom_call.1} parent=1 // pred_fallthru
      _
    // Predicated region
    $region78: #{tpu_custom_call.1} parent=1 // pred_check
      _
    $region79: #{tpu_custom_call.1} parent=1 // pred_check_branch
      %151 = sbr.rel (0) target = $region81
    $region80: #{tpu_custom_call.1} parent=1 // pred_region
      %153 = dma.done [#allocation12], 1024
    $region81: #{tpu_custom_call.1} parent=1 // pred_fallthru
      _
    %v155 = vld [vmem:[#allocation2] sm:$0xff]
    %v156 = vld [vmem:[#allocation2 + $0x8] sm:$0xff]
    %v157 = vpack.c.bf16 %v156, %v155
    %v158 = vld [vmem:[#allocation5] sm:$0xf]
    %v159 = vld [vmem:[#allocation5 + $0x4] sm:$0xf]
    %v160 = vld [vmem:[#allocation5 + $0x8] sm:$0xf]
    %v161 = vld [vmem:[#allocation5 + $0xc] sm:$0xf]
    %v162 = vld [vmem:[%s2] sm:$0x1]
    %v164 = vperm.slane %v162, 0
    %v170 = vunpack.c.l.b16 %v158
    %v171 = vunpack.c.l.b16 %v159
    %v172 = vunpack.c.l.b16 %v160
    %v173 = vunpack.c.l.b16 %v161
    %v174 = vpack.c.b16 %v171, %v170
    %v175 = vpack.c.b16 %v173, %v172
    %vm178 = vcmask 261120
    %v180 = vsel %vm178, %v157, 0
    %182 = vmatpush.bf16.msra.mxu0 0
    %183 = vmatpush.bf16.msra.mxu0 0
    %184 = vmatpush.bf16.msra.mxu0 0
    %185 = vmatpush.bf16.msra.mxu0 0
    %186 = vmatpush.bf16.msra.mxu0 0
    %187 = vmatpush.bf16.msra.mxu0 0
    %188 = vmatpush.bf16.msra.mxu0 %v175
    %189 = vmatpush.bf16.msra.mxu0 %v174
    %190 = vmatmul.bf16.gmra.mxu0 %v180
    %v191 = vpop.f32.mrf.mxu0
    %v192 = vadd.f32 %v164, %v191
    %v193 = vpop.f32.mrf.mxu0
    %v194 = vadd.f32 %v164, %v193
    %195 = vdwg.mxu0
    %v196 = vmax.f32 %v192, 0.0
    %v197 = vmax.f32 %v194, 0.0
    %v198 = vpack.c.bf16 %v197, %v196
    %v199 = vld [vmem:[#allocation7] sm:$0xf]
    %v200 = vld [vmem:[#allocation7 + $0x4] sm:$0xf]
    %v201 = vld [vmem:[#allocation7 + $0x8] sm:$0xf]
    %v202 = vld [vmem:[#allocation7 + $0xc] sm:$0xf]
    %v203 = vld [vmem:[#allocation7 + $0x10] sm:$0xf]
    %v204 = vld [vmem:[#allocation7 + $0x14] sm:$0xf]
    %v205 = vld [vmem:[#allocation7 + $0x18] sm:$0xf]
    %v206 = vld [vmem:[#allocation7 + $0x1c] sm:$0xf]
    %v207 = vld [vmem:[#allocation7 + $0x20] sm:$0xf]
    %v208 = vld [vmem:[#allocation7 + $0x24] sm:$0xf]
    %v209 = vld [vmem:[#allocation7 + $0x28] sm:$0xf]
    %v210 = vld [vmem:[#allocation7 + $0x2c] sm:$0xf]
    %v211 = vld [vmem:[#allocation7 + $0x30] sm:$0xf]
    %v212 = vld [vmem:[#allocation7 + $0x34] sm:$0xf]
    %v213 = vld [vmem:[#allocation7 + $0x38] sm:$0xf]
    %v214 = vld [vmem:[#allocation7 + $0x3c] sm:$0xf]
    %v215 = vld [vmem:[%s4] sm:$0x1]
    %v217 = vperm.slane %v215, 0
    %v235 = vunpack.c.l.b16 %v199
    %v236 = vunpack.c.l.b16 %v200
    %v237 = vunpack.c.l.b16 %v201
    %v238 = vunpack.c.l.b16 %v202
    %v239 = vunpack.c.l.b16 %v203
    %v240 = vunpack.c.l.b16 %v204
    %v241 = vunpack.c.l.b16 %v205
    %v242 = vunpack.c.l.b16 %v206
    %v243 = vunpack.c.l.b16 %v207
    %v244 = vunpack.c.l.b16 %v208
    %v245 = vunpack.c.l.b16 %v209
    %v246 = vunpack.c.l.b16 %v210
    %v247 = vunpack.c.l.b16 %v211
    %v248 = vunpack.c.l.b16 %v212
    %v249 = vunpack.c.l.b16 %v213
    %v250 = vunpack.c.l.b16 %v214
    %v251 = vpack.c.b16 %v236, %v235
    %v252 = vpack.c.b16 %v238, %v237
    %v253 = vpack.c.b16 %v240, %v239
    %v254 = vpack.c.b16 %v242, %v241
    %v255 = vpack.c.b16 %v244, %v243
    %v256 = vpack.c.b16 %v246, %v245
    %v257 = vpack.c.b16 %v248, %v247
    %v258 = vpack.c.b16 %v250, %v249
    %267 = vmatpush.bf16.msra.mxu0 %v258
    %268 = vmatpush.bf16.msra.mxu0 %v257
    %269 = vmatpush.bf16.msra.mxu0 %v256
    %270 = vmatpush.bf16.msra.mxu0 %v255
    %271 = vmatpush.bf16.msra.mxu0 %v254
    %272 = vmatpush.bf16.msra.mxu0 %v253
    %273 = vmatpush.bf16.msra.mxu0 %v252
    %274 = vmatpush.bf16.msra.mxu0 %v251
    %275 = vmatmul.bf16.gmra.mxu0 %v198
    %v276 = vpop.f32.mrf.mxu0
    %v277 = vadd.f32 %v217, %v276
    %v278 = vpop.f32.mrf.mxu0
    %v279 = vadd.f32 %v217, %v278
    %280 = vdwg.mxu0
    %v281 = vmax.f32 %v277, 0.0
    %v282 = vmax.f32 %v279, 0.0
    %v283 = vpack.c.bf16 %v282, %v281
    %v284 = vld [vmem:[#allocation8] sm:$0xf]
    %v285 = vld [vmem:[#allocation8 + $0x4] sm:$0xf]
    %v286 = vld [vmem:[#allocation8 + $0x8] sm:$0xf]
    %v287 = vld [vmem:[#allocation8 + $0xc] sm:$0xf]
    %v288 = vld [vmem:[#allocation8 + $0x10] sm:$0xf]
    %v289 = vld [vmem:[#allocation8 + $0x14] sm:$0xf]
    %v290 = vld [vmem:[#allocation8 + $0x18] sm:$0xf]
    %v291 = vld [vmem:[#allocation8 + $0x1c] sm:$0xf]
    %v292 = vld [vmem:[#allocation8 + $0x20] sm:$0xf]
    %v293 = vld [vmem:[#allocation8 + $0x24] sm:$0xf]
    %v294 = vld [vmem:[#allocation8 + $0x28] sm:$0xf]
    %v295 = vld [vmem:[#allocation8 + $0x2c] sm:$0xf]
    %v296 = vld [vmem:[#allocation8 + $0x30] sm:$0xf]
    %v297 = vld [vmem:[#allocation8 + $0x34] sm:$0xf]
    %v298 = vld [vmem:[#allocation8 + $0x38] sm:$0xf]
    %v299 = vld [vmem:[#allocation8 + $0x3c] sm:$0xf]
    %v300 = vld [vmem:[%s6] sm:$0x1]
    %v302 = vperm.slane %v300, 0
    %v320 = vunpack.c.l.b16 %v284
    %v321 = vunpack.c.l.b16 %v285
    %v322 = vunpack.c.l.b16 %v286
    %v323 = vunpack.c.l.b16 %v287
    %v324 = vunpack.c.l.b16 %v288
    %v325 = vunpack.c.l.b16 %v289
    %v326 = vunpack.c.l.b16 %v290
    %v327 = vunpack.c.l.b16 %v291
    %v328 = vunpack.c.l.b16 %v292
    %v329 = vunpack.c.l.b16 %v293
    %v330 = vunpack.c.l.b16 %v294
    %v331 = vunpack.c.l.b16 %v295
    %v332 = vunpack.c.l.b16 %v296
    %v333 = vunpack.c.l.b16 %v297
    %v334 = vunpack.c.l.b16 %v298
    %v335 = vunpack.c.l.b16 %v299
    %v336 = vpack.c.b16 %v321, %v320
    %v337 = vpack.c.b16 %v323, %v322
    %v338 = vpack.c.b16 %v325, %v324
    %v339 = vpack.c.b16 %v327, %v326
    %v340 = vpack.c.b16 %v329, %v328
    %v341 = vpack.c.b16 %v331, %v330
    %v342 = vpack.c.b16 %v333, %v332
    %v343 = vpack.c.b16 %v335, %v334
    %352 = vmatpush.bf16.msra.mxu0 %v343
    %353 = vmatpush.bf16.msra.mxu0 %v342
    %354 = vmatpush.bf16.msra.mxu0 %v341
    %355 = vmatpush.bf16.msra.mxu0 %v340
    %356 = vmatpush.bf16.msra.mxu0 %v339
    %357 = vmatpush.bf16.msra.mxu0 %v338
    %358 = vmatpush.bf16.msra.mxu0 %v337
    %359 = vmatpush.bf16.msra.mxu0 %v336
    %360 = vmatmul.bf16.gmra.mxu0 %v283
    %v361 = vpop.f32.mrf.mxu0
    %v362 = vadd.f32 %v302, %v361
    %v363 = vpop.f32.mrf.mxu0
    %v364 = vadd.f32 %v302, %v363
    %365 = vdwg.mxu0
    %v366 = vmax.f32 %v362, 0.0
    %v367 = vmax.f32 %v364, 0.0
    %v368 = vpack.c.bf16 %v367, %v366
    %v369 = vld [vmem:[#allocation10] sm:$0xf]
    %v370 = vld [vmem:[#allocation10 + $0x4] sm:$0xf]
    %v371 = vld [vmem:[#allocation10 + $0x8] sm:$0xf]
    %v372 = vld [vmem:[#allocation10 + $0xc] sm:$0xf]
    %v373 = vld [vmem:[#allocation10 + $0x10] sm:$0xf]
    %v374 = vld [vmem:[#allocation10 + $0x14] sm:$0xf]
    %v375 = vld [vmem:[#allocation10 + $0x18] sm:$0xf]
    %v376 = vld [vmem:[#allocation10 + $0x1c] sm:$0xf]
    %v377 = vld [vmem:[#allocation10 + $0x20] sm:$0xf]
    %v378 = vld [vmem:[#allocation10 + $0x24] sm:$0xf]
    %v379 = vld [vmem:[#allocation10 + $0x28] sm:$0xf]
    %v380 = vld [vmem:[#allocation10 + $0x2c] sm:$0xf]
    %v381 = vld [vmem:[#allocation10 + $0x30] sm:$0xf]
    %v382 = vld [vmem:[#allocation10 + $0x34] sm:$0xf]
    %v383 = vld [vmem:[#allocation10 + $0x38] sm:$0xf]
    %v384 = vld [vmem:[#allocation10 + $0x3c] sm:$0xf]
    %v385 = vld [vmem:[%s8] sm:$0x1]
    %v387 = vperm.slane %v385, 0
    %v405 = vunpack.c.l.b16 %v369
    %v406 = vunpack.c.l.b16 %v370
    %v407 = vunpack.c.l.b16 %v371
    %v408 = vunpack.c.l.b16 %v372
    %v409 = vunpack.c.l.b16 %v373
    %v410 = vunpack.c.l.b16 %v374
    %v411 = vunpack.c.l.b16 %v375
    %v412 = vunpack.c.l.b16 %v376
    %v413 = vunpack.c.l.b16 %v377
    %v414 = vunpack.c.l.b16 %v378
    %v415 = vunpack.c.l.b16 %v379
    %v416 = vunpack.c.l.b16 %v380
    %v417 = vunpack.c.l.b16 %v381
    %v418 = vunpack.c.l.b16 %v382
    %v419 = vunpack.c.l.b16 %v383
    %v420 = vunpack.c.l.b16 %v384
    %v421 = vpack.c.b16 %v406, %v405
    %v422 = vpack.c.b16 %v408, %v407
    %v423 = vpack.c.b16 %v410, %v409
    %v424 = vpack.c.b16 %v412, %v411
    %v425 = vpack.c.b16 %v414, %v413
    %v426 = vpack.c.b16 %v416, %v415
    %v427 = vpack.c.b16 %v418, %v417
    %v428 = vpack.c.b16 %v420, %v419
    %437 = vmatpush.bf16.msra.mxu0 %v428
    %438 = vmatpush.bf16.msra.mxu0 %v427
    %439 = vmatpush.bf16.msra.mxu0 %v426
    %440 = vmatpush.bf16.msra.mxu0 %v425
    %441 = vmatpush.bf16.msra.mxu0 %v424
    %442 = vmatpush.bf16.msra.mxu0 %v423
    %443 = vmatpush.bf16.msra.mxu0 %v422
    %444 = vmatpush.bf16.msra.mxu0 %v421
    %445 = vmatmul.bf16.gmra.mxu0 %v368
    %v446 = vpop.f32.mrf.mxu0
    %v447 = vadd.f32 %v387, %v446
    %v448 = vpop.f32.mrf.mxu0
    %v449 = vadd.f32 %v387, %v448
    %450 = vdwg.mxu0
    %v451 = vmax.f32 %v447, 0.0
    %v452 = vmax.f32 %v449, 0.0
    %v453 = vpack.c.bf16 %v452, %v451
    %v454 = vld [vmem:[#allocation11] sm:$0xf]
    %v455 = vld [vmem:[#allocation11 + $0x4] sm:$0xf]
    %v456 = vld [vmem:[#allocation11 + $0x8] sm:$0xf]
    %v457 = vld [vmem:[#allocation11 + $0xc] sm:$0xf]
    %v458 = vld [vmem:[#allocation11 + $0x10] sm:$0xf]
    %v459 = vld [vmem:[#allocation11 + $0x14] sm:$0xf]
    %v460 = vld [vmem:[#allocation11 + $0x18] sm:$0xf]
    %v461 = vld [vmem:[#allocation11 + $0x1c] sm:$0xf]
    %v462 = vld [vmem:[#allocation11 + $0x20] sm:$0xf]
    %v463 = vld [vmem:[#allocation11 + $0x24] sm:$0xf]
    %v464 = vld [vmem:[#allocation11 + $0x28] sm:$0xf]
    %v465 = vld [vmem:[#allocation11 + $0x2c] sm:$0xf]
    %v466 = vld [vmem:[#allocation11 + $0x30] sm:$0xf]
    %v467 = vld [vmem:[#allocation11 + $0x34] sm:$0xf]
    %v468 = vld [vmem:[#allocation11 + $0x38] sm:$0xf]
    %v469 = vld [vmem:[#allocation11 + $0x3c] sm:$0xf]
    %v470 = vld [vmem:[%s10] sm:$0x1]
    %v472 = vperm.slane %v470, 0
    %v490 = vunpack.c.l.b16 %v454
    %v491 = vunpack.c.l.b16 %v455
    %v492 = vunpack.c.l.b16 %v456
    %v493 = vunpack.c.l.b16 %v457
    %v494 = vunpack.c.l.b16 %v458
    %v495 = vunpack.c.l.b16 %v459
    %v496 = vunpack.c.l.b16 %v460
    %v497 = vunpack.c.l.b16 %v461
    %v498 = vunpack.c.l.b16 %v462
    %v499 = vunpack.c.l.b16 %v463
    %v500 = vunpack.c.l.b16 %v464
    %v501 = vunpack.c.l.b16 %v465
    %v502 = vunpack.c.l.b16 %v466
    %v503 = vunpack.c.l.b16 %v467
    %v504 = vunpack.c.l.b16 %v468
    %v505 = vunpack.c.l.b16 %v469
    %v506 = vpack.c.b16 %v491, %v490
    %v507 = vpack.c.b16 %v493, %v492
    %v508 = vpack.c.b16 %v495, %v494
    %v509 = vpack.c.b16 %v497, %v496
    %v510 = vpack.c.b16 %v499, %v498
    %v511 = vpack.c.b16 %v501, %v500
    %v512 = vpack.c.b16 %v503, %v502
    %v513 = vpack.c.b16 %v505, %v504
    %522 = vmatpush.bf16.msra.mxu0 %v513
    %523 = vmatpush.bf16.msra.mxu0 %v512
    %524 = vmatpush.bf16.msra.mxu0 %v511
    %525 = vmatpush.bf16.msra.mxu0 %v510
    %526 = vmatpush.bf16.msra.mxu0 %v509
    %527 = vmatpush.bf16.msra.mxu0 %v508
    %528 = vmatpush.bf16.msra.mxu0 %v507
    %529 = vmatpush.bf16.msra.mxu0 %v506
    %530 = vmatmul.bf16.gmra.mxu0 %v453
    %v531 = vpop.f32.mrf.mxu0
    %v532 = vadd.f32 %v472, %v531
    %v533 = vpop.f32.mrf.mxu0
    %v534 = vadd.f32 %v472, %v533
    %535 = vdwg.mxu0
    %v536 = vmax.f32 %v532, 0.0
    %v537 = vmax.f32 %v534, 0.0
    %v538 = vpack.c.bf16 %v537, %v536
    %v539 = vld [vmem:[#allocation13] sm:$0xf]
    %v540 = vld [vmem:[#allocation13 + $0x4] sm:$0xf]
    %v541 = vld [vmem:[#allocation13 + $0x8] sm:$0xf]
    %v542 = vld [vmem:[#allocation13 + $0xc] sm:$0xf]
    %v543 = vld [vmem:[#allocation13 + $0x10] sm:$0xf]
    %v544 = vld [vmem:[#allocation13 + $0x14] sm:$0xf]
    %v545 = vld [vmem:[#allocation13 + $0x18] sm:$0xf]
    %v546 = vld [vmem:[#allocation13 + $0x1c] sm:$0xf]
    %v547 = vld [vmem:[#allocation13 + $0x20] sm:$0xf]
    %v548 = vld [vmem:[#allocation13 + $0x24] sm:$0xf]
    %v549 = vld [vmem:[#allocation13 + $0x28] sm:$0xf]
    %v550 = vld [vmem:[#allocation13 + $0x2c] sm:$0xf]
    %v551 = vld [vmem:[#allocation13 + $0x30] sm:$0xf]
    %v552 = vld [vmem:[#allocation13 + $0x34] sm:$0xf]
    %v553 = vld [vmem:[#allocation13 + $0x38] sm:$0xf]
    %v554 = vld [vmem:[#allocation13 + $0x3c] sm:$0xf]
    %v555 = vld [vmem:[%s12] sm:$0x1]
    %v557 = vperm.slane %v555, 0
    %v575 = vunpack.c.l.b16 %v539
    %v576 = vunpack.c.l.b16 %v540
    %v577 = vunpack.c.l.b16 %v541
    %v578 = vunpack.c.l.b16 %v542
    %v579 = vunpack.c.l.b16 %v543
    %v580 = vunpack.c.l.b16 %v544
    %v581 = vunpack.c.l.b16 %v545
    %v582 = vunpack.c.l.b16 %v546
    %v583 = vunpack.c.l.b16 %v547
    %v584 = vunpack.c.l.b16 %v548
    %v585 = vunpack.c.l.b16 %v549
    %v586 = vunpack.c.l.b16 %v550
    %v587 = vunpack.c.l.b16 %v551
    %v588 = vunpack.c.l.b16 %v552
    %v589 = vunpack.c.l.b16 %v553
    %v590 = vunpack.c.l.b16 %v554
    %v591 = vpack.c.b16 %v576, %v575
    %v592 = vpack.c.b16 %v578, %v577
    %v593 = vpack.c.b16 %v580, %v579
    %v594 = vpack.c.b16 %v582, %v581
    %v595 = vpack.c.b16 %v584, %v583
    %v596 = vpack.c.b16 %v586, %v585
    %v597 = vpack.c.b16 %v588, %v587
    %v598 = vpack.c.b16 %v590, %v589
    %607 = vmatpush.bf16.msra.mxu0 %v598
    %608 = vmatpush.bf16.msra.mxu0 %v597
    %609 = vmatpush.bf16.msra.mxu0 %v596
    %610 = vmatpush.bf16.msra.mxu0 %v595
    %611 = vmatpush.bf16.msra.mxu0 %v594
    %612 = vmatpush.bf16.msra.mxu0 %v593
    %613 = vmatpush.bf16.msra.mxu0 %v592
    %614 = vmatpush.bf16.msra.mxu0 %v591
    %615 = vmatmul.bf16.gmra.mxu0 %v538
    %v616 = vpop.f32.mrf.mxu0
    %v617 = vadd.f32 %v557, %v616
    %v618 = vpop.f32.mrf.mxu0
    %v619 = vadd.f32 %v557, %v618
    %620 = vdwg.mxu0
    %v621 = vxor.u32 %v617, 2147483648
    %v622 = vxor.u32 %v619, 2147483648
    %v623 = vmul.f32 %v621, 1.442695
    %v624 = vpow.pop %v623
    %v625 = vmul.f32 %v622, 1.442695
    %v626 = vpow.pop %v625
    %v627 = vadd.f32 %v624, 1.0
    %v628 = vadd.f32 %v626, 1.0
    %v629 = vrcp.pop %v627
    %v630 = vmul.f32 %v627, %v629
    %v631 = vsub.f32 1.0, %v630
    %v632 = vmul.f32 %v629, %v631
    %v633 = vadd.f32 %v629, %v632
    %vm634 = vweird.f32 %v627
    %vm635 = vweird.f32 %v629
    %vm636 = vmor %vm634, %vm635
    %v637 = vsel %vm636, %v629, %v633
    %v638 = vand.u32 2147483647, %v627
    %vm639 = vcmp.eq.f32.partialorder %v638, 8.507059e+37
    %v640 = vand.u32 %v627, 2147483648
    %v641 = vor.u32 1.1754944e-38, %v640
    %v642 = vsel %vm639, %v641, %v637
    %v643 = vmul.f32 1.0, %v642
    %v644 = vrcp.pop %v628
    %v645 = vmul.f32 %v628, %v644
    %v646 = vsub.f32 1.0, %v645
    %v647 = vmul.f32 %v644, %v646
    %v648 = vadd.f32 %v644, %v647
    %vm649 = vweird.f32 %v628
    %vm650 = vweird.f32 %v644
    %vm651 = vmor %vm649, %vm650
    %v652 = vsel %vm651, %v644, %v648
    %v653 = vand.u32 2147483647, %v628
    %vm654 = vcmp.eq.f32.partialorder %v653, 8.507059e+37
    %v655 = vand.u32 %v628, 2147483648
    %v656 = vor.u32 1.1754944e-38, %v655
    %v657 = vsel %vm654, %v656, %v652
    %v658 = vmul.f32 1.0, %v657
    %v659 = vpack.c.bf16 %v643, %v643
    %v660 = vpack.c.bf16 %v658, %v658
    %661 = vst [vmem:[#allocation14] sm:$0xf] %v659
    %662 = vst [vmem:[#allocation14 + $0x4] sm:$0xf] %v660
    // Predicated region
    $region82: #{tpu_custom_call.1} parent=1 // pred_check
      _
    $region83: #{tpu_custom_call.1} parent=1 // pred_check_branch
      %664 = sbr.rel (0) target = $region85
    $region84: #{tpu_custom_call.1} parent=1 // pred_region
      %666 = vsyncadd [#allocation4], 0
      %s667 = sshll.u32 [#allocation14], 4
      %s668 = int_to_ptr.vmem [resolvable:$true] %s667
      %s669 = sshll.u32 %s13, 4
      %s670 = int_to_ptr.hbm [resolvable:$true] %s669
      %675 = dma.vmem_to_hbm [thread:$0]  %s668, 128, %s670, [#allocation4], 64, 64, 4
    $region85: #{tpu_custom_call.1} parent=1 // pred_fallthru
      _
    // Predicated region
    $region86: #{tpu_custom_call.1} parent=1 // pred_check
      _
    $region87: #{tpu_custom_call.1} parent=1 // pred_check_branch
      %677 = sbr.rel (0) target = $region89
    $region88: #{tpu_custom_call.1} parent=1 // pred_region
      %679 = dma.done [#allocation4], 128
    $region89: #{tpu_custom_call.1} parent=1 // pred_fallthru
      _
    %680 = vsyncpa [#allocation3], 1
    %681 = vsyncpa [#allocation6], 1
    %682 = vsyncpa [#allocation9], 1
    %683 = vsyncpa [#allocation12], 1
    %684 = vsyncpa [#allocation4], 1

// kernel: tpu_custom_call.1
$region0: #{tpu_custom_call.1}
  #allocation0 [shape = 'u32[]', space=smem, size = 0x4, offset = 0x4, fixed_abs, tag = 'smem constant byte address 0x4 - core index']
  #allocation1 [shape = 'u32[72,128]{1,0:T(1,128)}', space=vmem, size = 0x9000, scoped, tag = 'internal scratch']
  %s0 = inlined_call_operand.hbm [shape: f32[16,32], index: 0, kind: input, shape index: {}]
  %s1 = inlined_call_operand.hbm [shape: bf16[32,128], index: 1, kind: input, shape index: {}]
  %s2 = inlined_call_operand.vmem [shape: f32[1,128], index: 2, kind: input, shape index: {}]
  %s3 = inlined_call_operand.hbm [shape: bf16[128,128], index: 3, kind: input, shape index: {}]
  %s4 = inlined_call_operand.vmem [shape: f32[1,128], index: 4, kind: input, shape index: {}]
  %s5 = inlined_call_operand.hbm [shape: bf16[128,128], index: 5, kind: input, shape index: {}]
  %s6 = inlined_call_operand.vmem [shape: f32[1,128], index: 6, kind: input, shape index: {}]
  %s7 = inlined_call_operand.hbm [shape: bf16[128,128], index: 7, kind: input, shape index: {}]
  %s8 = inlined_call_operand.vmem [shape: f32[1,128], index: 8, kind: input, shape index: {}]
  %s9 = inlined_call_operand.hbm [shape: bf16[128,128], index: 9, kind: input, shape index: {}]
  %s10 = inlined_call_operand.vmem [shape: f32[1,128], index: 10, kind: input, shape index: {}]
  %s11 = inlined_call_operand.hbm [shape: bf16[128,128], index: 11, kind: input, shape index: {}]
  %s12 = inlined_call_operand.vmem [shape: f32[1,128], index: 12, kind: input, shape index: {}]
  %s13 = inlined_call_operand.hbm [shape: bf16[16,128], index: 13, kind: output, shape index: {}]
  %s14 = sld [smem:[#allocation0]]
  $region90: #{tpu_custom_call.1} parent=0
    _
  %s16 = ssub.s32 1, %s14
  %s17 = scalar_select 0, %s16, %s14
  $region1: #{tpu_custom_call.1} parent=0
    #allocation2 [shape = 'u8[8192]{0}', space=vmem, size = 0x2000, scoped, tag = 'input window, operand 0, single buffered']
    #allocation3 [shape = 's32[1]{0}', space=sflag, size = 0x4, scoped, tag = 'scoped memory for tpu_custom_call.1']
    #allocation4 [shape = 's32[1]{0}', space=sflag, size = 0x4, scoped, tag = 'scoped memory for tpu_custom_call.1']
    #allocation5 [shape = 'u8[8192]{0}', space=vmem, size = 0x2000, scoped, tag = 'input window, operand 1, single buffered']
    #allocation6 [shape = 's32[1]{0}', space=sflag, size = 0x4, scoped, tag = 'scoped memory for tpu_custom_call.1']
    #allocation7 [shape = 'u8[32768]{0}', space=vmem, size = 0x8000, scoped, tag = 'input window, operand 3, single buffered']
    #allocation8 [shape = 'u8[32768]{0}', space=vmem, size = 0x8000, scoped, tag = 'input window, operand 5, single buffered']
    #allocation9 [shape = 's32[1]{0}', space=sflag, size = 0x4, scoped, tag = 'scoped memory for tpu_custom_call.1']
    #allocation10 [shape = 'u8[32768]{0}', space=vmem, size = 0x8000, scoped, tag = 'input window, operand 7, single buffered']
    #allocation11 [shape = 'u8[32768]{0}', space=vmem, size = 0x8000, scoped, tag = 'input window, operand 9, single buffered']
    #allocation12 [shape = 's32[1]{0}', space=sflag, size = 0x4, scoped, tag = 'scoped memory for tpu_custom_call.1']
    #allocation13 [shape = 'u8[32768]{0}', space=vmem, size = 0x8000, scoped, tag = 'input window, operand 11, single buffered']
    #allocation14 [shape = 'u8[4096]{0}', space=vmem, size = 0x1000, scoped, tag = 'output window, operand 0, single buffered']
    %18 = vsyncpa [#allocation3], 0
    %19 = vsyncpa [#allocation6], 0
    %20 = vsyncpa [#allocation9], 0
    %21 = vsyncpa [#allocation12], 0
    %22 = vsyncpa [#allocation4], 0
    // Predicated region
    $region2: #{tpu_custom_call.1} parent=1 // pred_check
      _
    $region3: #{tpu_custom_call.1} parent=1 // pred_check_branch
      %24 = sbr.rel (0) target = $region5
    $region4: #{tpu_custom_call.1} parent=1 // pred_region
      %26 = vsyncadd [#allocation3], 0
      %s27 = sshll.u32 %s0, 4
      %s28 = int_to_ptr.hbm [resolvable:$true] %s27
      %s29 = sshll.u32 [#allocation2], 4
      %s30 = int_to_ptr.vmem [resolvable:$true] %s29
      %35 = dma.hbm_to_vmem [thread:$0]  %s28, 256, %s30, [#allocation3], 128, 128, 8
    $region5: #{tpu_custom_call.1} parent=1 // pred_fallthru
      _
    // Predicated region
    $region6: #{tpu_custom_call.1} parent=1 // pred_check
      _
    $region7: #{tpu_custom_call.1} parent=1 // pred_check_branch
      %37 = sbr.rel (0) target = $region9
    $region8: #{tpu_custom_call.1} parent=1 // pred_region
      %39 = vsyncadd [#allocation6], 0
      %s40 = sshll.u32 %s1, 4
      %s41 = int_to_ptr.hbm [resolvable:$true] %s40
      %s42 = sshll.u32 [#allocation5], 4
      %s43 = int_to_ptr.vmem [resolvable:$true] %s42
      %48 = dma.hbm_to_vmem [thread:$0]  %s41, 256, %s43, [#allocation6], 64, 64, 4
    $region9: #{tpu_custom_call.1} parent=1 // pred_fallthru
      _
    // Predicated region
    $region10: #{tpu_custom_call.1} parent=1 // pred_check
      _
    $region11: #{tpu_custom_call.1} parent=1 // pred_check_branch
      %50 = sbr.rel (0) target = $region13
    $region12: #{tpu_custom_call.1} parent=1 // pred_region
      _
    $region13: #{tpu_custom_call.1} parent=1 // pred_fallthru
      _
    // Predicated region
    $region14: #{tpu_custom_call.1} parent=1 // pred_check
      _
    $region15: #{tpu_custom_call.1} parent=1 // pred_check_branch
      %52 = sbr.rel (0) target = $region17
    $region16: #{tpu_custom_call.1} parent=1 // pred_region
      %54 = vsyncadd [#allocation6], 0
      %s55 = sshll.u32 %s3, 4
      %s56 = int_to_ptr.hbm [resolvable:$true] %s55
      %s57 = sshll.u32 [#allocation7], 4
      %s58 = int_to_ptr.vmem [resolvable:$true] %s57
      %63 = dma.hbm_to_vmem [thread:$0]  %s56, 1024, %s58, [#allocation6], 64, 64, 4
    $region17: #{tpu_custom_call.1} parent=1 // pred_fallthru
      _
    // Predicated region
    $region18: #{tpu_custom_call.1} parent=1 // pred_check
      _
    $region19: #{tpu_custom_call.1} parent=1 // pred_check_branch
      %65 = sbr.rel (0) target = $region21
    $region20: #{tpu_custom_call.1} parent=1 // pred_region
      _
    $region21: #{tpu_custom_call.1} parent=1 // pred_fallthru
      _
    // Predicated region
    $region22: #{tpu_custom_call.1} parent=1 // pred_check
      _
    $region23: #{tpu_custom_call.1} parent=1 // pred_check_branch
      %67 = sbr.rel (0) target = $region25
    $region24: #{tpu_custom_call.1} parent=1 // pred_region
      %69 = vsyncadd [#allocation9], 0
      %s70 = sshll.u32 %s5, 4
      %s71 = int_to_ptr.hbm [resolvable:$true] %s70
      %s72 = sshll.u32 [#allocation8], 4
      %s73 = int_to_ptr.vmem [resolvable:$true] %s72
      %78 = dma.hbm_to_vmem [thread:$0]  %s71, 1024, %s73, [#allocation9], 64, 64, 4
    $region25: #{tpu_custom_call.1} parent=1 // pred_fallthru
      _
    // Predicated region
    $region26: #{tpu_custom_call.1} parent=1 // pred_check
      _
    $region27: #{tpu_custom_call.1} parent=1 // pred_check_branch
      %80 = sbr.rel (0) target = $region29
    $region28: #{tpu_custom_call.1} parent=1 // pred_region
      _
    $region29: #{tpu_custom_call.1} parent=1 // pred_fallthru
      _
    // Predicated region
    $region30: #{tpu_custom_call.1} parent=1 // pred_check
      _
    $region31: #{tpu_custom_call.1} parent=1 // pred_check_branch
      %82 = sbr.rel (0) target = $region33
    $region32: #{tpu_custom_call.1} parent=1 // pred_region
      %84 = vsyncadd [#allocation9], 0
      %s85 = sshll.u32 %s7, 4
      %s86 = int_to_ptr.hbm [resolvable:$true] %s85
      %s87 = sshll.u32 [#allocation10], 4
      %s88 = int_to_ptr.vmem [resolvable:$true] %s87
      %93 = dma.hbm_to_vmem [thread:$0]  %s86, 1024, %s88, [#allocation9], 64, 64, 4
    $region33: #{tpu_custom_call.1} parent=1 // pred_fallthru
      _
    // Predicated region
    $region34: #{tpu_custom_call.1} parent=1 // pred_check
      _
    $region35: #{tpu_custom_call.1} parent=1 // pred_check_branch
      %95 = sbr.rel (0) target = $region37
    $region36: #{tpu_custom_call.1} parent=1 // pred_region
      _
    $region37: #{tpu_custom_call.1} parent=1 // pred_fallthru
      _
    // Predicated region
    $region38: #{tpu_custom_call.1} parent=1 // pred_check
      _
    $region39: #{tpu_custom_call.1} parent=1 // pred_check_branch
      %97 = sbr.rel (0) target = $region41
    $region40: #{tpu_custom_call.1} parent=1 // pred_region
      %99 = vsyncadd [#allocation12], 0
      %s100 = sshll.u32 %s9, 4
      %s101 = int_to_ptr.hbm [resolvable:$true] %s100
      %s102 = sshll.u32 [#allocation11], 4
      %s103 = int_to_ptr.vmem [resolvable:$true] %s102
      %108 = dma.hbm_to_vmem [thread:$0]  %s101, 1024, %s103, [#allocation12], 64, 64, 4
    $region41: #{tpu_custom_call.1} parent=1 // pred_fallthru
      _
    // Predicated region
    $region42: #{tpu_custom_call.1} parent=1 // pred_check
      _
    $region43: #{tpu_custom_call.1} parent=1 // pred_check_branch
      %110 = sbr.rel (0) target = $region45
    $region44: #{tpu_custom_call.1} parent=1 // pred_region
      _
    $region45: #{tpu_custom_call.1} parent=1 // pred_fallthru
      _
    // Predicated region
    $region46: #{tpu_custom_call.1} parent=1 // pred_check
      _
    $region47: #{tpu_custom_call.1} parent=1 // pred_check_branch
      %112 = sbr.rel (0) target = $region49
    $region48: #{tpu_custom_call.1} parent=1 // pred_region
      %114 = vsyncadd [#allocation12], 0
      %s115 = sshll.u32 %s11, 4
      %s116 = int_to_ptr.hbm [resolvable:$true] %s115
      %s117 = sshll.u32 [#allocation13], 4
      %s118 = int_to_ptr.vmem [resolvable:$true] %s117
      %123 = dma.hbm_to_vmem [thread:$0]  %s116, 1024, %s118, [#allocation12], 64, 64, 4
    $region49: #{tpu_custom_call.1} parent=1 // pred_fallthru
      _
    // Predicated region
    $region50: #{tpu_custom_call.1} parent=1 // pred_check
      _
    $region51: #{tpu_custom_call.1} parent=1 // pred_check_branch
      %125 = sbr.rel (0) target = $region53
    $region52: #{tpu_custom_call.1} parent=1 // pred_region
      _
    $region53: #{tpu_custom_call.1} parent=1 // pred_fallthru
      _
    // Predicated region
    $region54: #{tpu_custom_call.1} parent=1 // pred_check
      _
    $region55: #{tpu_custom_call.1} parent=1 // pred_check_branch
      %127 = sbr.rel (0) target = $region57
    $region56: #{tpu_custom_call.1} parent=1 // pred_region
      %129 = dma.done [#allocation3], 256
    $region57: #{tpu_custom_call.1} parent=1 // pred_fallthru
      _
    // Predicated region
    $region58: #{tpu_custom_call.1} parent=1 // pred_check
      _
    $region59: #{tpu_custom_call.1} parent=1 // pred_check_branch
      %131 = sbr.rel (0) target = $region61
    $region60: #{tpu_custom_call.1} parent=1 // pred_region
      %133 = dma.done [#allocation6], 256
    $region61: #{tpu_custom_call.1} parent=1 // pred_fallthru
      _
    // Predicated region
    $region62: #{tpu_custom_call.1} parent=1 // pred_check
      _
    $region63: #{tpu_custom_call.1} parent=1 // pred_check_branch
      %135 = sbr.rel (0) target = $region65
    $region64: #{tpu_custom_call.1} parent=1 // pred_region
      %137 = dma.done [#allocation6], 1024
    $region65: #{tpu_custom_call.1} parent=1 // pred_fallthru
      _
    // Predicated region
    $region66: #{tpu_custom_call.1} parent=1 // pred_check
      _
    $region67: #{tpu_custom_call.1} parent=1 // pred_check_branch
      %139 = sbr.rel (0) target = $region69
    $region68: #{tpu_custom_call.1} parent=1 // pred_region
      %141 = dma.done [#allocation9], 1024
    $region69: #{tpu_custom_call.1} parent=1 // pred_fallthru
      _
    // Predicated region
    $region70: #{tpu_custom_call.1} parent=1 // pred_check
      _
    $region71: #{tpu_custom_call.1} parent=1 // pred_check_branch
      %143 = sbr.rel (0) target = $region73
    $region72: #{tpu_custom_call.1} parent=1 // pred_region
      %145 = dma.done [#allocation9], 1024
    $region73: #{tpu_custom_call.1} parent=1 // pred_fallthru
      _
    // Predicated region
    $region74: #{tpu_custom_call.1} parent=1 // pred_check
      _
    $region75: #{tpu_custom_call.1} parent=1 // pred_check_branch
      %147 = sbr.rel (0) target = $region77
    $region76: #{tpu_custom_call.1} parent=1 // pred_region
      %149 = dma.done [#allocation12], 1024
    $region77: #{tpu_custom_call.1} parent=1 // pred_fallthru
      _
    // Predicated region
    $region78: #{tpu_custom_call.1} parent=1 // pred_check
      _
    $region79: #{tpu_custom_call.1} parent=1 // pred_check_branch
      %151 = sbr.rel (0) target = $region81
    $region80: #{tpu_custom_call.1} parent=1 // pred_region
      %153 = dma.done [#allocation12], 1024
    $region81: #{tpu_custom_call.1} parent=1 // pred_fallthru
      _
    %v155 = vld [vmem:[#allocation2] sm:$0xff]
    %v156 = vld [vmem:[#allocation2 + $0x8] sm:$0xff]
    %v157 = vpack.c.bf16 %v156, %v155
    %v158 = vld [vmem:[#allocation5] sm:$0xf]
    %v159 = vld [vmem:[#allocation5 + $0x4] sm:$0xf]
    %v160 = vld [vmem:[#allocation5 + $0x8] sm:$0xf]
    %v161 = vld [vmem:[#allocation5 + $0xc] sm:$0xf]
    %v162 = vld [vmem:[%s2] sm:$0x1]
    %v164 = vperm.slane %v162, 0
    %v170 = vunpack.c.l.b16 %v158
    %v171 = vunpack.c.l.b16 %v159
    %v172 = vunpack.c.l.b16 %v160
    %v173 = vunpack.c.l.b16 %v161
    %v174 = vpack.c.b16 %v171, %v170
    %v175 = vpack.c.b16 %v173, %v172
    %vm178 = vcmask 261120
    %v180 = vsel %vm178, %v157, 0
    %182 = vmatpush.bf16.msra.mxu0 0
    %183 = vmatpush.bf16.msra.mxu0 0
    %184 = vmatpush.bf16.msra.mxu0 0
    %185 = vmatpush.bf16.msra.mxu0 0
    %186 = vmatpush.bf16.msra.mxu0 0
    %187 = vmatpush.bf16.msra.mxu0 0
    %188 = vmatpush.bf16.msra.mxu0 %v175
    %189 = vmatpush.bf16.msra.mxu0 %v174
    %190 = vmatmul.bf16.gmra.mxu0 %v180
    %v191 = vpop.f32.mrf.mxu0
    %v192 = vadd.f32 %v164, %v191
    %v193 = vpop.f32.mrf.mxu0
    %v194 = vadd.f32 %v164, %v193
    %195 = vdwg.mxu0
    %v196 = vmax.f32 %v192, 0.0
    %v197 = vmax.f32 %v194, 0.0
    %v198 = vpack.c.bf16 %v197, %v196
    %v199 = vld [vmem:[#allocation7] sm:$0xf]
    %v200 = vld [vmem:[#allocation7 + $0x4] sm:$0xf]
    %v201 = vld [vmem:[#allocation7 + $0x8] sm:$0xf]
    %v202 = vld [vmem:[#allocation7 + $0xc] sm:$0xf]
    %v203 = vld [vmem:[#allocation7 + $0x10] sm:$0xf]
    %v204 = vld [vmem:[#allocation7 + $0x14] sm:$0xf]
    %v205 = vld [vmem:[#allocation7 + $0x18] sm:$0xf]
    %v206 = vld [vmem:[#allocation7 + $0x1c] sm:$0xf]
    %v207 = vld [vmem:[#allocation7 + $0x20] sm:$0xf]
    %v208 = vld [vmem:[#allocation7 + $0x24] sm:$0xf]
    %v209 = vld [vmem:[#allocation7 + $0x28] sm:$0xf]
    %v210 = vld [vmem:[#allocation7 + $0x2c] sm:$0xf]
    %v211 = vld [vmem:[#allocation7 + $0x30] sm:$0xf]
    %v212 = vld [vmem:[#allocation7 + $0x34] sm:$0xf]
    %v213 = vld [vmem:[#allocation7 + $0x38] sm:$0xf]
    %v214 = vld [vmem:[#allocation7 + $0x3c] sm:$0xf]
    %v215 = vld [vmem:[%s4] sm:$0x1]
    %v217 = vperm.slane %v215, 0
    %v235 = vunpack.c.l.b16 %v199
    %v236 = vunpack.c.l.b16 %v200
    %v237 = vunpack.c.l.b16 %v201
    %v238 = vunpack.c.l.b16 %v202
    %v239 = vunpack.c.l.b16 %v203
    %v240 = vunpack.c.l.b16 %v204
    %v241 = vunpack.c.l.b16 %v205
    %v242 = vunpack.c.l.b16 %v206
    %v243 = vunpack.c.l.b16 %v207
    %v244 = vunpack.c.l.b16 %v208
    %v245 = vunpack.c.l.b16 %v209
    %v246 = vunpack.c.l.b16 %v210
    %v247 = vunpack.c.l.b16 %v211
    %v248 = vunpack.c.l.b16 %v212
    %v249 = vunpack.c.l.b16 %v213
    %v250 = vunpack.c.l.b16 %v214
    %v251 = vpack.c.b16 %v236, %v235
    %v252 = vpack.c.b16 %v238, %v237
    %v253 = vpack.c.b16 %v240, %v239
    %v254 = vpack.c.b16 %v242, %v241
    %v255 = vpack.c.b16 %v244, %v243
    %v256 = vpack.c.b16 %v246, %v245
    %v257 = vpack.c.b16 %v248, %v247
    %v258 = vpack.c.b16 %v250, %v249
    %267 = vmatpush.bf16.msra.mxu0 %v258
    %268 = vmatpush.bf16.msra.mxu0 %v257
    %269 = vmatpush.bf16.msra.mxu0 %v256
    %270 = vmatpush.bf16.msra.mxu0 %v255
    %271 = vmatpush.bf16.msra.mxu0 %v254
    %272 = vmatpush.bf16.msra.mxu0 %v253
    %273 = vmatpush.bf16.msra.mxu0 %v252
    %274 = vmatpush.bf16.msra.mxu0 %v251
    %275 = vmatmul.bf16.gmra.mxu0 %v198
    %v276 = vpop.f32.mrf.mxu0
    %v277 = vadd.f32 %v217, %v276
    %v278 = vpop.f32.mrf.mxu0
    %v279 = vadd.f32 %v217, %v278
    %280 = vdwg.mxu0
    %v281 = vmax.f32 %v277, 0.0
    %v282 = vmax.f32 %v279, 0.0
    %v283 = vpack.c.bf16 %v282, %v281
    %v284 = vld [vmem:[#allocation8] sm:$0xf]
    %v285 = vld [vmem:[#allocation8 + $0x4] sm:$0xf]
    %v286 = vld [vmem:[#allocation8 + $0x8] sm:$0xf]
    %v287 = vld [vmem:[#allocation8 + $0xc] sm:$0xf]
    %v288 = vld [vmem:[#allocation8 + $0x10] sm:$0xf]
    %v289 = vld [vmem:[#allocation8 + $0x14] sm:$0xf]
    %v290 = vld [vmem:[#allocation8 + $0x18] sm:$0xf]
    %v291 = vld [vmem:[#allocation8 + $0x1c] sm:$0xf]
    %v292 = vld [vmem:[#allocation8 + $0x20] sm:$0xf]
    %v293 = vld [vmem:[#allocation8 + $0x24] sm:$0xf]
    %v294 = vld [vmem:[#allocation8 + $0x28] sm:$0xf]
    %v295 = vld [vmem:[#allocation8 + $0x2c] sm:$0xf]
    %v296 = vld [vmem:[#allocation8 + $0x30] sm:$0xf]
    %v297 = vld [vmem:[#allocation8 + $0x34] sm:$0xf]
    %v298 = vld [vmem:[#allocation8 + $0x38] sm:$0xf]
    %v299 = vld [vmem:[#allocation8 + $0x3c] sm:$0xf]
    %v300 = vld [vmem:[%s6] sm:$0x1]
    %v302 = vperm.slane %v300, 0
    %v320 = vunpack.c.l.b16 %v284
    %v321 = vunpack.c.l.b16 %v285
    %v322 = vunpack.c.l.b16 %v286
    %v323 = vunpack.c.l.b16 %v287
    %v324 = vunpack.c.l.b16 %v288
    %v325 = vunpack.c.l.b16 %v289
    %v326 = vunpack.c.l.b16 %v290
    %v327 = vunpack.c.l.b16 %v291
    %v328 = vunpack.c.l.b16 %v292
    %v329 = vunpack.c.l.b16 %v293
    %v330 = vunpack.c.l.b16 %v294
    %v331 = vunpack.c.l.b16 %v295
    %v332 = vunpack.c.l.b16 %v296
    %v333 = vunpack.c.l.b16 %v297
    %v334 = vunpack.c.l.b16 %v298
    %v335 = vunpack.c.l.b16 %v299
    %v336 = vpack.c.b16 %v321, %v320
    %v337 = vpack.c.b16 %v323, %v322
    %v338 = vpack.c.b16 %v325, %v324
    %v339 = vpack.c.b16 %v327, %v326
    %v340 = vpack.c.b16 %v329, %v328
    %v341 = vpack.c.b16 %v331, %v330
    %v342 = vpack.c.b16 %v333, %v332
    %v343 = vpack.c.b16 %v335, %v334
    %352 = vmatpush.bf16.msra.mxu0 %v343
    %353 = vmatpush.bf16.msra.mxu0 %v342
    %354 = vmatpush.bf16.msra.mxu0 %v341
    %355 = vmatpush.bf16.msra.mxu0 %v340
    %356 = vmatpush.bf16.msra.mxu0 %v339
    %357 = vmatpush.bf16.msra.mxu0 %v338
    %358 = vmatpush.bf16.msra.mxu0 %v337
    %359 = vmatpush.bf16.msra.mxu0 %v336
    %360 = vmatmul.bf16.gmra.mxu0 %v283
    %v361 = vpop.f32.mrf.mxu0
    %v362 = vadd.f32 %v302, %v361
    %v363 = vpop.f32.mrf.mxu0
    %v364 = vadd.f32 %v302, %v363
    %365 = vdwg.mxu0
    %v366 = vmax.f32 %v362, 0.0
    %v367 = vmax.f32 %v364, 0.0
    %v368 = vpack.c.bf16 %v367, %v366
    %v369 = vld [vmem:[#allocation10] sm:$0xf]
    %v370 = vld [vmem:[#allocation10 + $0x4] sm:$0xf]
    %v371 = vld [vmem:[#allocation10 + $0x8] sm:$0xf]
    %v372 = vld [vmem:[#allocation10 + $0xc] sm:$0xf]
    %v373 = vld [vmem:[#allocation10 + $0x10] sm:$0xf]
    %v374 = vld [vmem:[#allocation10 + $0x14] sm:$0xf]
    %v375 = vld [vmem:[#allocation10 + $0x18] sm:$0xf]
    %v376 = vld [vmem:[#allocation10 + $0x1c] sm:$0xf]
    %v377 = vld [vmem:[#allocation10 + $0x20] sm:$0xf]
    %v378 = vld [vmem:[#allocation10 + $0x24] sm:$0xf]
    %v379 = vld [vmem:[#allocation10 + $0x28] sm:$0xf]
    %v380 = vld [vmem:[#allocation10 + $0x2c] sm:$0xf]
    %v381 = vld [vmem:[#allocation10 + $0x30] sm:$0xf]
    %v382 = vld [vmem:[#allocation10 + $0x34] sm:$0xf]
    %v383 = vld [vmem:[#allocation10 + $0x38] sm:$0xf]
    %v384 = vld [vmem:[#allocation10 + $0x3c] sm:$0xf]
    %v385 = vld [vmem:[%s8] sm:$0x1]
    %v387 = vperm.slane %v385, 0
    %v405 = vunpack.c.l.b16 %v369
    %v406 = vunpack.c.l.b16 %v370
    %v407 = vunpack.c.l.b16 %v371
    %v408 = vunpack.c.l.b16 %v372
    %v409 = vunpack.c.l.b16 %v373
    %v410 = vunpack.c.l.b16 %v374
    %v411 = vunpack.c.l.b16 %v375
    %v412 = vunpack.c.l.b16 %v376
    %v413 = vunpack.c.l.b16 %v377
    %v414 = vunpack.c.l.b16 %v378
    %v415 = vunpack.c.l.b16 %v379
    %v416 = vunpack.c.l.b16 %v380
    %v417 = vunpack.c.l.b16 %v381
    %v418 = vunpack.c.l.b16 %v382
    %v419 = vunpack.c.l.b16 %v383
    %v420 = vunpack.c.l.b16 %v384
    %v421 = vpack.c.b16 %v406, %v405
    %v422 = vpack.c.b16 %v408, %v407
    %v423 = vpack.c.b16 %v410, %v409
    %v424 = vpack.c.b16 %v412, %v411
    %v425 = vpack.c.b16 %v414, %v413
    %v426 = vpack.c.b16 %v416, %v415
    %v427 = vpack.c.b16 %v418, %v417
    %v428 = vpack.c.b16 %v420, %v419
    %437 = vmatpush.bf16.msra.mxu0 %v428
    %438 = vmatpush.bf16.msra.mxu0 %v427
    %439 = vmatpush.bf16.msra.mxu0 %v426
    %440 = vmatpush.bf16.msra.mxu0 %v425
    %441 = vmatpush.bf16.msra.mxu0 %v424
    %442 = vmatpush.bf16.msra.mxu0 %v423
    %443 = vmatpush.bf16.msra.mxu0 %v422
    %444 = vmatpush.bf16.msra.mxu0 %v421
    %445 = vmatmul.bf16.gmra.mxu0 %v368
    %v446 = vpop.f32.mrf.mxu0
    %v447 = vadd.f32 %v387, %v446
    %v448 = vpop.f32.mrf.mxu0
    %v449 = vadd.f32 %v387, %v448
    %450 = vdwg.mxu0
    %v451 = vmax.f32 %v447, 0.0
    %v452 = vmax.f32 %v449, 0.0
    %v453 = vpack.c.bf16 %v452, %v451
    %v454 = vld [vmem:[#allocation11] sm:$0xf]
    %v455 = vld [vmem:[#allocation11 + $0x4] sm:$0xf]
    %v456 = vld [vmem:[#allocation11 + $0x8] sm:$0xf]
    %v457 = vld [vmem:[#allocation11 + $0xc] sm:$0xf]
    %v458 = vld [vmem:[#allocation11 + $0x10] sm:$0xf]
    %v459 = vld [vmem:[#allocation11 + $0x14] sm:$0xf]
    %v460 = vld [vmem:[#allocation11 + $0x18] sm:$0xf]
    %v461 = vld [vmem:[#allocation11 + $0x1c] sm:$0xf]
    %v462 = vld [vmem:[#allocation11 + $0x20] sm:$0xf]
    %v463 = vld [vmem:[#allocation11 + $0x24] sm:$0xf]
    %v464 = vld [vmem:[#allocation11 + $0x28] sm:$0xf]
    %v465 = vld [vmem:[#allocation11 + $0x2c] sm:$0xf]
    %v466 = vld [vmem:[#allocation11 + $0x30] sm:$0xf]
    %v467 = vld [vmem:[#allocation11 + $0x34] sm:$0xf]
    %v468 = vld [vmem:[#allocation11 + $0x38] sm:$0xf]
    %v469 = vld [vmem:[#allocation11 + $0x3c] sm:$0xf]
    %v470 = vld [vmem:[%s10] sm:$0x1]
    %v472 = vperm.slane %v470, 0
    %v490 = vunpack.c.l.b16 %v454
    %v491 = vunpack.c.l.b16 %v455
    %v492 = vunpack.c.l.b16 %v456
    %v493 = vunpack.c.l.b16 %v457
    %v494 = vunpack.c.l.b16 %v458
    %v495 = vunpack.c.l.b16 %v459
    %v496 = vunpack.c.l.b16 %v460
    %v497 = vunpack.c.l.b16 %v461
    %v498 = vunpack.c.l.b16 %v462
    %v499 = vunpack.c.l.b16 %v463
    %v500 = vunpack.c.l.b16 %v464
    %v501 = vunpack.c.l.b16 %v465
    %v502 = vunpack.c.l.b16 %v466
    %v503 = vunpack.c.l.b16 %v467
    %v504 = vunpack.c.l.b16 %v468
    %v505 = vunpack.c.l.b16 %v469
    %v506 = vpack.c.b16 %v491, %v490
    %v507 = vpack.c.b16 %v493, %v492
    %v508 = vpack.c.b16 %v495, %v494
    %v509 = vpack.c.b16 %v497, %v496
    %v510 = vpack.c.b16 %v499, %v498
    %v511 = vpack.c.b16 %v501, %v500
    %v512 = vpack.c.b16 %v503, %v502
    %v513 = vpack.c.b16 %v505, %v504
    %522 = vmatpush.bf16.msra.mxu0 %v513
    %523 = vmatpush.bf16.msra.mxu0 %v512
    %524 = vmatpush.bf16.msra.mxu0 %v511
    %525 = vmatpush.bf16.msra.mxu0 %v510
    %526 = vmatpush.bf16.msra.mxu0 %v509
    %527 = vmatpush.bf16.msra.mxu0 %v508
    %528 = vmatpush.bf16.msra.mxu0 %v507
    %529 = vmatpush.bf16.msra.mxu0 %v506
    %530 = vmatmul.bf16.gmra.mxu0 %v453
    %v531 = vpop.f32.mrf.mxu0
    %v532 = vadd.f32 %v472, %v531
    %v533 = vpop.f32.mrf.mxu0
    %v534 = vadd.f32 %v472, %v533
    %535 = vdwg.mxu0
    %v536 = vmax.f32 %v532, 0.0
    %v537 = vmax.f32 %v534, 0.0
    %v538 = vpack.c.bf16 %v537, %v536
    %v539 = vld [vmem:[#allocation13] sm:$0xf]
    %v540 = vld [vmem:[#allocation13 + $0x4] sm:$0xf]
    %v541 = vld [vmem:[#allocation13 + $0x8] sm:$0xf]
    %v542 = vld [vmem:[#allocation13 + $0xc] sm:$0xf]
    %v543 = vld [vmem:[#allocation13 + $0x10] sm:$0xf]
    %v544 = vld [vmem:[#allocation13 + $0x14] sm:$0xf]
    %v545 = vld [vmem:[#allocation13 + $0x18] sm:$0xf]
    %v546 = vld [vmem:[#allocation13 + $0x1c] sm:$0xf]
    %v547 = vld [vmem:[#allocation13 + $0x20] sm:$0xf]
    %v548 = vld [vmem:[#allocation13 + $0x24] sm:$0xf]
    %v549 = vld [vmem:[#allocation13 + $0x28] sm:$0xf]
    %v550 = vld [vmem:[#allocation13 + $0x2c] sm:$0xf]
    %v551 = vld [vmem:[#allocation13 + $0x30] sm:$0xf]
    %v552 = vld [vmem:[#allocation13 + $0x34] sm:$0xf]
    %v553 = vld [vmem:[#allocation13 + $0x38] sm:$0xf]
    %v554 = vld [vmem:[#allocation13 + $0x3c] sm:$0xf]
    %v555 = vld [vmem:[%s12] sm:$0x1]
    %v557 = vperm.slane %v555, 0
    %v575 = vunpack.c.l.b16 %v539
    %v576 = vunpack.c.l.b16 %v540
    %v577 = vunpack.c.l.b16 %v541
    %v578 = vunpack.c.l.b16 %v542
    %v579 = vunpack.c.l.b16 %v543
    %v580 = vunpack.c.l.b16 %v544
    %v581 = vunpack.c.l.b16 %v545
    %v582 = vunpack.c.l.b16 %v546
    %v583 = vunpack.c.l.b16 %v547
    %v584 = vunpack.c.l.b16 %v548
    %v585 = vunpack.c.l.b16 %v549
    %v586 = vunpack.c.l.b16 %v550
    %v587 = vunpack.c.l.b16 %v551
    %v588 = vunpack.c.l.b16 %v552
    %v589 = vunpack.c.l.b16 %v553
    %v590 = vunpack.c.l.b16 %v554
    %v591 = vpack.c.b16 %v576, %v575
    %v592 = vpack.c.b16 %v578, %v577
    %v593 = vpack.c.b16 %v580, %v579
    %v594 = vpack.c.b16 %v582, %v581
    %v595 = vpack.c.b16 %v584, %v583
    %v596 = vpack.c.b16 %v586, %v585
    %v597 = vpack.c.b16 %v588, %v587
    %v598 = vpack.c.b16 %v590, %v589
    %607 = vmatpush.bf16.msra.mxu0 %v598
    %608 = vmatpush.bf16.msra.mxu0 %v597
    %609 = vmatpush.bf16.msra.mxu0 %v596
    %610 = vmatpush.bf16.msra.mxu0 %v595
    %611 = vmatpush.bf16.msra.mxu0 %v594
    %612 = vmatpush.bf16.msra.mxu0 %v593
    %613 = vmatpush.bf16.msra.mxu0 %v592
    %614 = vmatpush.bf16.msra.mxu0 %v591
    %615 = vmatmul.bf16.gmra.mxu0 %v538
    %v616 = vpop.f32.mrf.mxu0
    %v617 = vadd.f32 %v557, %v616
    %v618 = vpop.f32.mrf.mxu0
    %v619 = vadd.f32 %v557, %v618
    %620 = vdwg.mxu0
    %v621 = vxor.u32 %v617, 2147483648
    %v622 = vxor.u32 %v619, 2147483648
    %v623 = vmul.f32 %v621, 1.442695
    %v624 = vpow.pop %v623
    %v625 = vmul.f32 %v622, 1.442695
    %v626 = vpow.pop %v625
    %v627 = vadd.f32 %v624, 1.0
    %v628 = vadd.f32 %v626, 1.0
    %v629 = vrcp.pop %v627
    %v630 = vmul.f32 %v627, %v629
    %v631 = vsub.f32 1.0, %v630
    %v632 = vmul.f32 %v629, %v631
    %v633 = vadd.f32 %v629, %v632
    %vm634 = vweird.f32 %v627
    %vm635 = vweird.f32 %v629
    %vm636 = vmor %vm634, %vm635
    %v637 = vsel %vm636, %v629, %v633
    %v638 = vand.u32 2147483647, %v627
    %vm639 = vcmp.eq.f32.partialorder %v638, 8.507059e+37
    %v640 = vand.u32 %v627, 2147483648
    %v641 = vor.u32 1.1754944e-38, %v640
    %v642 = vsel %vm639, %v641, %v637
    %v643 = vmul.f32 1.0, %v642
    %v644 = vrcp.pop %v628
    %v645 = vmul.f32 %v628, %v644
    %v646 = vsub.f32 1.0, %v645
    %v647 = vmul.f32 %v644, %v646
    %v648 = vadd.f32 %v644, %v647
    %vm649 = vweird.f32 %v628
    %vm650 = vweird.f32 %v644
    %vm651 = vmor %vm649, %vm650
    %v652 = vsel %vm651, %v644, %v648
    %v653 = vand.u32 2147483647, %v628
    %vm654 = vcmp.eq.f32.partialorder %v653, 8.507059e+37
    %v655 = vand.u32 %v628, 2147483648
    %v656 = vor.u32 1.1754944e-38, %v655
    %v657 = vsel %vm654, %v656, %v652
    %v658 = vmul.f32 1.0, %v657
    %v659 = vpack.c.bf16 %v643, %v643
    %v660 = vpack.c.bf16 %v658, %v658
    %661 = vst [vmem:[#allocation14] sm:$0xf] %v659
    %662 = vst [vmem:[#allocation14 + $0x4] sm:$0xf] %v660
    // Predicated region
    $region82: #{tpu_custom_call.1} parent=1 // pred_check
      _
    $region83: #{tpu_custom_call.1} parent=1 // pred_check_branch
      %664 = sbr.rel (0) target = $region85
    $region84: #{tpu_custom_call.1} parent=1 // pred_region
      %666 = vsyncadd [#allocation4], 0
      %s667 = sshll.u32 [#allocation14], 4
      %s668 = int_to_ptr.vmem [resolvable:$true] %s667
      %s669 = sshll.u32 %s13, 4
      %s670 = int_to_ptr.hbm [resolvable:$true] %s669
      %675 = dma.vmem_to_hbm [thread:$0]  %s668, 128, %s670, [#allocation4], 64, 64, 4
    $region85: #{tpu_custom_call.1} parent=1 // pred_fallthru
      _
    // Predicated region
    $region86: #{tpu_custom_call.1} parent=1 // pred_check
      _
    $region87: #{tpu_custom_call.1} parent=1 // pred_check_branch
      %677 = sbr.rel (0) target = $region89
    $region88: #{tpu_custom_call.1} parent=1 // pred_region
      %679 = dma.done [#allocation4], 128
    $region89: #{tpu_custom_call.1} parent=1 // pred_fallthru
      _
    %680 = vsyncpa [#allocation3], 1
    %681 = vsyncpa [#allocation6], 1
    %682 = vsyncpa [#allocation9], 1
    %683 = vsyncpa [#allocation12], 1
    %684 = vsyncpa [#allocation4], 1

</llo_original>
